<compile_context>
chip_gen: v7x
topology: tpu7x:2x2x1
jax: 0.10.0
libtpu: 0.0.40
codegen_flags: <defaults>
</compile_context>

<pallas_src>
from functools import partial

import jax
import jax.numpy as jnp
from jax.experimental import pallas as pl
from jax.experimental.pallas import tpu as pltpu


# ------------------------- fused 2-layer LSTM + head kernel -------------------------
def fused_lstm2_kernel(x_ref, wih1_ref, whh1_ref, b1_ref,
                       wih2_ref, whh2_ref, b2_ref,
                       wlin_ref, blin_ref, out_ref,
                       xp_scr, hseq_scr, *, T, BP, H):
    # x_ref:    (T*BP, D)   time-major, batch padded to BP (multiple of 8)
    # wih*_ref: (D_in, 4H)  = W_ih^T   (g-columns pre-scaled by 2)
    # whh*_ref: (H, 4H)     = W_hh^T   (g-columns pre-scaled by 2)
    # b*_ref:   (1, 4H)     = b_ih + b_hh (g-columns pre-scaled by 2)
    # wlin_ref: (H, O), blin_ref: (1, O)
    # out_ref:  (T*BP, O)
    # xp_scr:   (T*BP, 4H)  per-layer hoisted input projection
    # hseq_scr: (T*BP, H)   per-layer hidden-state sequence

    # ---- layer-1 input projection: one big MXU matmul over all timesteps ----
    xp_scr[...] = (jnp.dot(x_ref[...], wih1_ref[...],
                           preferred_element_type=jnp.float32) + b1_ref[...])

    def recurrence(whh):  # whh: (H, 4H) value, loaded once outside the loop
        def step(t, carry):
            h_prev, c_prev = carry
            r0 = pl.multiple_of(t * BP, BP)               # aligned sublane offset
            gates = xp_scr[pl.ds(r0, BP), :] + jnp.dot(
                h_prev, whh, preferred_element_type=jnp.float32)   # (BP, 4H)
            # One full-vreg sigmoid; PyTorch gate order i, f, g, o.
            sg = jax.nn.sigmoid(gates)
            i_g = sg[:, 0 * H:1 * H]
            f_g = sg[:, 1 * H:2 * H]
            g_g = 2.0 * sg[:, 2 * H:3 * H] - 1.0          # tanh(g) = 2*sigmoid(2g) - 1
            o_g = sg[:, 3 * H:4 * H]
            c_new = f_g * c_prev + i_g * g_g
            h_new = o_g * jnp.tanh(c_new)
            hseq_scr[pl.ds(r0, BP), :] = h_new
            return (h_new, c_new)

        z = jnp.zeros((BP, H), jnp.float32)
        jax.lax.fori_loop(0, T, step, (z, z), unroll=True)

    recurrence(whh1_ref[...])

    # ---- layer-2 input projection from the full layer-1 hidden sequence ----
    xp_scr[...] = (jnp.dot(hseq_scr[...], wih2_ref[...],
                           preferred_element_type=jnp.float32) + b2_ref[...])

    recurrence(whh2_ref[...])

    # ---- fused linear head over the whole sequence (single store) ----
    out_ref[...] = (jnp.dot(hseq_scr[...], wlin_ref[...],
                            preferred_element_type=jnp.float32)
                    + blin_ref[...]).astype(out_ref.dtype)


# ----------------------------------- wrapper -----------------------------------
def _prep_layer(w_ih, w_hh, b_ih, b_hh):
    """Transpose weights and pre-scale the 'g' gate block by 2 (tanh via sigmoid)."""
    H4 = w_ih.shape[0]
    H = H4 // 4
    scale = jnp.concatenate([jnp.ones((2 * H,), jnp.float32),
                             jnp.full((H,), 2.0, jnp.float32),
                             jnp.ones((H,), jnp.float32)])
    wih_t = (w_ih.astype(jnp.float32) * scale[:, None]).T          # (D_in, 4H)
    whh_t = (w_hh.astype(jnp.float32) * scale[:, None]).T          # (H, 4H)
    b = ((b_ih + b_hh).astype(jnp.float32) * scale).reshape(1, H4)  # (1, 4H)
    return wih_t, whh_t, b


def lstm_module_forward(x_btd, params):
    """Equivalent of LSTM.forward (do_init=True path, zero initial states).

    x_btd: (B, T, input_dim) batch-first.  Returns y_pred: (B, T, output_dim).
    """
    B, T, D = x_btd.shape
    layers = params["lstm"]
    assert len(layers) == 2, "fused kernel is specialized for num_layers=2"
    H = layers[0]["w_hh"].shape[1]
    O = params["lin_w"].shape[0]
    BP = ((B + 7) // 8) * 8                       # pad batch to a sublane multiple

    # Time-major layout, row = t*BP + b, padded batch rows are zeros (layout
    # plumbing only; the kernel then uses aligned full-sublane slices per step).
    x_tm = jnp.transpose(x_btd.astype(jnp.float32), (1, 0, 2))      # (T, B, D)
    if BP != B:
        x_tm = jnp.pad(x_tm, ((0, 0), (0, BP - B), (0, 0)))
    x2d = x_tm.reshape(T * BP, D)

    wih1, whh1, b1 = _prep_layer(layers[0]["w_ih"], layers[0]["w_hh"],
                                 layers[0]["b_ih"], layers[0]["b_hh"])
    wih2, whh2, b2 = _prep_layer(layers[1]["w_ih"], layers[1]["w_hh"],
                                 layers[1]["b_ih"], layers[1]["b_hh"])
    wlin_t = jnp.transpose(params["lin_w"].astype(jnp.float32))      # (H, O)
    blin = params["lin_b"].astype(jnp.float32).reshape(1, O)

    y_flat = pl.pallas_call(
        partial(fused_lstm2_kernel, T=T, BP=BP, H=H),
        out_shape=jax.ShapeDtypeStruct((T * BP, O), jnp.float32),
        in_specs=[pl.BlockSpec(memory_space=pltpu.MemorySpace.VMEM)] * 9,
        out_specs=pl.BlockSpec(memory_space=pltpu.MemorySpace.VMEM),
        scratch_shapes=[pltpu.VMEM((T * BP, 4 * H), jnp.float32),
                        pltpu.VMEM((T * BP, H), jnp.float32)],
    )(x2d, wih1, whh1, b1, wih2, whh2, b2, wlin_t, blin)

    y = y_flat.reshape(T, BP, O)[:, :B, :]        # drop batch padding
    return jnp.transpose(y, (1, 0, 2))            # (B, T, O)


# -------------------------- pure-JAX reference (check) --------------------------
def _ref_forward(x_btd, params):
    h = jnp.transpose(x_btd, (1, 0, 2)).astype(jnp.float32)
    for layer in params["lstm"]:
        w_ih, w_hh = layer["w_ih"], layer["w_hh"]
        b = layer["b_ih"] + layer["b_hh"]
        Hd = w_hh.shape[1]
        B = h.shape[1]

        def step(carry, x_t):
            hp, cp = carry
            g = x_t @ w_ih.T + hp @ w_hh.T + b
            i = jax.nn.sigmoid(g[:, :Hd])
            f = jax.nn.sigmoid(g[:, Hd:2 * Hd])
            gg = jnp.tanh(g[:, 2 * Hd:3 * Hd])
            o = jax.nn.sigmoid(g[:, 3 * Hd:])
            c = f * cp + i * gg
            hn = o * jnp.tanh(c)
            return (hn, c), hn

        init = (jnp.zeros((B, Hd), jnp.float32), jnp.zeros((B, Hd), jnp.float32))
        _, h = jax.lax.scan(step, init, h)
    h_bt = jnp.transpose(h, (1, 0, 2))
    return h_bt @ params["lin_w"].T + params["lin_b"]


# ------------------------------------- main -------------------------------------
if __name__ == "__main__":
    B, T = 2, 8
    input_dim, hidden_dim, output_dim, num_layers = 16, 32, 1, 2

    key = jax.random.PRNGKey(0)
    k_x, key = jax.random.split(key)
    x = jax.random.normal(k_x, (B, T, input_dim), dtype=jnp.float32)

    # Deterministic parameter init (PyTorch-style uniform(-1/sqrt(H), 1/sqrt(H))).
    scale = 1.0 / (hidden_dim ** 0.5)
    lstm_params = []
    for layer in range(num_layers):
        d_in = input_dim if layer == 0 else hidden_dim
        ks = jax.random.split(key, 5)
        key = ks[0]
        lstm_params.append({
            "w_ih": jax.random.uniform(ks[1], (4 * hidden_dim, d_in),
                                       minval=-scale, maxval=scale, dtype=jnp.float32),
            "w_hh": jax.random.uniform(ks[2], (4 * hidden_dim, hidden_dim),
                                       minval=-scale, maxval=scale, dtype=jnp.float32),
            "b_ih": jax.random.uniform(ks[3], (4 * hidden_dim,),
                                       minval=-scale, maxval=scale, dtype=jnp.float32),
            "b_hh": jax.random.uniform(ks[4], (4 * hidden_dim,),
                                       minval=-scale, maxval=scale, dtype=jnp.float32),
        })
    k_w, k_b = jax.random.split(key)
    params = {
        "lstm": lstm_params,
        # LinearZeroInit defines no custom init -> default nn.Linear init.
        "lin_w": jax.random.uniform(k_w, (output_dim, hidden_dim),
                                    minval=-scale, maxval=scale, dtype=jnp.float32),
        "lin_b": jax.random.uniform(k_b, (output_dim,),
                                    minval=-scale, maxval=scale, dtype=jnp.float32),
    }

    fwd = jax.jit(lstm_module_forward)
    y = jax.block_until_ready(fwd(x, params))
    assert y.shape == (B, T, output_dim), y.shape

    y_ref = jax.block_until_ready(_ref_forward(x, params))
    assert jnp.allclose(y, y_ref, atol=1e-4, rtol=1e-4), float(jnp.abs(y - y_ref).max())

    print("KERNEL_OK")
</pallas_src>

<mosaic_0001>
module attributes {stable_mosaic.version = 11 : i64} {
  func.func @fused_lstm2_kernel(%arg0: memref<64x16xf32, #tpu.memory_space<vmem>>, %arg1: memref<16x128xf32, #tpu.memory_space<vmem>>, %arg2: memref<32x128xf32, #tpu.memory_space<vmem>>, %arg3: memref<1x128xf32, #tpu.memory_space<vmem>>, %arg4: memref<32x128xf32, #tpu.memory_space<vmem>>, %arg5: memref<32x128xf32, #tpu.memory_space<vmem>>, %arg6: memref<1x128xf32, #tpu.memory_space<vmem>>, %arg7: memref<32x1xf32, #tpu.memory_space<vmem>>, %arg8: memref<1x1xf32, #tpu.memory_space<vmem>>, %arg9: memref<64x1xf32, #tpu.memory_space<vmem>>, %arg10: memref<64x128xf32, #tpu.memory_space<vmem>>, %arg11: memref<64x32xf32, #tpu.memory_space<vmem>>) attributes {dimension_semantics = [], scalar_prefetch = 0 : i64, scratch_operands = 2 : i64, tpu.core_type = #tpu.core_type<tc>} {
    %c0 = arith.constant 0 : index
    %c0_0 = arith.constant 0 : index
    %0 = vector.load %arg0[%c0, %c0_0] : memref<64x16xf32, #tpu.memory_space<vmem>>, vector<64x16xf32>
    %c0_1 = arith.constant 0 : index
    %c0_2 = arith.constant 0 : index
    %1 = vector.load %arg1[%c0_1, %c0_2] : memref<16x128xf32, #tpu.memory_space<vmem>>, vector<16x128xf32>
    %cst = arith.constant dense<0.000000e+00> : vector<64x128xf32>
    %2 = tpu.matmul %0, %1, %cst {dimension_numbers = #tpu.dot_dimension_numbers<[1], [0], [0], [1], [0, 0, 1, 1], [], []>} : vector<64x16xf32>, vector<16x128xf32>, vector<64x128xf32> -> vector<64x128xf32>
    %c0_3 = arith.constant 0 : index
    %c0_4 = arith.constant 0 : index
    %3 = vector.load %arg3[%c0_3, %c0_4] : memref<1x128xf32, #tpu.memory_space<vmem>>, vector<1x128xf32>
    %4 = vector.broadcast %3 : vector<1x128xf32> to vector<64x128xf32>
    %5 = arith.addf %2, %4 : vector<64x128xf32>
    %c0_5 = arith.constant 0 : index
    %c0_6 = arith.constant 0 : index
    %6 = vector.load %arg10[%c0_5, %c0_6] : memref<64x128xf32, #tpu.memory_space<vmem>>, vector<64x128xf32>
    tpu.vector_store %arg10[%c0_5, %c0_6], %5 {strides = array<i32>} : memref<64x128xf32, #tpu.memory_space<vmem>>, vector<64x128xf32>,
    %c0_7 = arith.constant 0 : index
    %c0_8 = arith.constant 0 : index
    %7 = vector.load %arg2[%c0_7, %c0_8] : memref<32x128xf32, #tpu.memory_space<vmem>>, vector<32x128xf32>
    %cst_9 = arith.constant 0.000000e+00 : f32
    %8 = vector.broadcast %cst_9 : f32 to vector<8x32xf32>
    %c0_i32 = arith.constant 0 : i32
    %c8_i32 = arith.constant 8 : i32
    %9 = arith.muli %c0_i32, %c8_i32 : i32
    %10 = tpu.assume_multiple %9, 8 : i32
    %11 = arith.index_cast %10 : i32 to index
    %c0_10 = arith.constant 0 : index
    %12 = vector.load %arg10[%11, %c0_10] : memref<64x128xf32, #tpu.memory_space<vmem>>, vector<8x128xf32>
    %cst_11 = arith.constant dense<0.000000e+00> : vector<8x128xf32>
    %13 = tpu.matmul %8, %7, %cst_11 {dimension_numbers = #tpu.dot_dimension_numbers<[1], [0], [0], [1], [0, 0, 1, 1], [], []>} : vector<8x32xf32>, vector<32x128xf32>, vector<8x128xf32> -> vector<8x128xf32>
    %14 = arith.addf %12, %13 : vector<8x128xf32>
    %15 = arith.negf %14 : vector<8x128xf32>
    %16 = math.exp %15 : vector<8x128xf32>
    %cst_12 = arith.constant 1.000000e+00 : f32
    %17 = vector.broadcast %cst_12 : f32 to vector<8x128xf32>
    %18 = arith.addf %17, %16 : vector<8x128xf32>
    %19 = arith.divf %17, %18 : vector<8x128xf32>
    %20 = vector.extract_strided_slice %19 {offsets = [0, 0], sizes = [8, 32], strides = [1, 1]} : vector<8x128xf32> to vector<8x32xf32>
    %21 = vector.extract_strided_slice %19 {offsets = [0, 32], sizes = [8, 32], strides = [1, 1]} : vector<8x128xf32> to vector<8x32xf32>
    %22 = vector.extract_strided_slice %19 {offsets = [0, 64], sizes = [8, 32], strides = [1, 1]} : vector<8x128xf32> to vector<8x32xf32>
    %cst_13 = arith.constant 2.000000e+00 : f32
    %23 = vector.broadcast %cst_13 : f32 to vector<8x32xf32>
    %24 = arith.mulf %23, %22 : vector<8x32xf32>
    %cst_14 = arith.constant 1.000000e+00 : f32
    %25 = vector.broadcast %cst_14 : f32 to vector<8x32xf32>
    %26 = arith.subf %24, %25 : vector<8x32xf32>
    %27 = vector.extract_strided_slice %19 {offsets = [0, 96], sizes = [8, 32], strides = [1, 1]} : vector<8x128xf32> to vector<8x32xf32>
    %28 = arith.mulf %21, %8 : vector<8x32xf32>
    %29 = arith.mulf %20, %26 : vector<8x32xf32>
    %30 = arith.addf %28, %29 : vector<8x32xf32>
    %31 = math.tanh %30 : vector<8x32xf32>
    %32 = arith.mulf %27, %31 : vector<8x32xf32>
    %33 = arith.index_cast %10 : i32 to index
    %c0_15 = arith.constant 0 : index
    %34 = vector.load %arg11[%33, %c0_15] : memref<64x32xf32, #tpu.memory_space<vmem>>, vector<8x32xf32>
    tpu.vector_store %arg11[%33, %c0_15], %32 {strides = array<i32>} : memref<64x32xf32, #tpu.memory_space<vmem>>, vector<8x32xf32>,
    %c1_i32 = arith.constant 1 : i32
    %c8_i32_16 = arith.constant 8 : i32
    %35 = arith.muli %c1_i32, %c8_i32_16 : i32
    %36 = tpu.assume_multiple %35, 8 : i32
    %37 = arith.index_cast %36 : i32 to index
    %c0_17 = arith.constant 0 : index
    %38 = vector.load %arg10[%37, %c0_17] : memref<64x128xf32, #tpu.memory_space<vmem>>, vector<8x128xf32>
    %cst_18 = arith.constant dense<0.000000e+00> : vector<8x128xf32>
    %39 = tpu.matmul %32, %7, %cst_18 {dimension_numbers = #tpu.dot_dimension_numbers<[1], [0], [0], [1], [0, 0, 1, 1], [], []>} : vector<8x32xf32>, vector<32x128xf32>, vector<8x128xf32> -> vector<8x128xf32>
    %40 = arith.addf %38, %39 : vector<8x128xf32>
    %41 = arith.negf %40 : vector<8x128xf32>
    %42 = math.exp %41 : vector<8x128xf32>
    %cst_19 = arith.constant 1.000000e+00 : f32
    %43 = vector.broadcast %cst_19 : f32 to vector<8x128xf32>
    %44 = arith.addf %43, %42 : vector<8x128xf32>
    %45 = arith.divf %43, %44 : vector<8x128xf32>
    %46 = vector.extract_strided_slice %45 {offsets = [0, 0], sizes = [8, 32], strides = [1, 1]} : vector<8x128xf32> to vector<8x32xf32>
    %47 = vector.extract_strided_slice %45 {offsets = [0, 32], sizes = [8, 32], strides = [1, 1]} : vector<8x128xf32> to vector<8x32xf32>
    %48 = vector.extract_strided_slice %45 {offsets = [0, 64], sizes = [8, 32], strides = [1, 1]} : vector<8x128xf32> to vector<8x32xf32>
    %cst_20 = arith.constant 2.000000e+00 : f32
    %49 = vector.broadcast %cst_20 : f32 to vector<8x32xf32>
    %50 = arith.mulf %49, %48 : vector<8x32xf32>
    %cst_21 = arith.constant 1.000000e+00 : f32
    %51 = vector.broadcast %cst_21 : f32 to vector<8x32xf32>
    %52 = arith.subf %50, %51 : vector<8x32xf32>
    %53 = vector.extract_strided_slice %45 {offsets = [0, 96], sizes = [8, 32], strides = [1, 1]} : vector<8x128xf32> to vector<8x32xf32>
    %54 = arith.mulf %47, %30 : vector<8x32xf32>
    %55 = arith.mulf %46, %52 : vector<8x32xf32>
    %56 = arith.addf %54, %55 : vector<8x32xf32>
    %57 = math.tanh %56 : vector<8x32xf32>
    %58 = arith.mulf %53, %57 : vector<8x32xf32>
    %59 = arith.index_cast %36 : i32 to index
    %c0_22 = arith.constant 0 : index
    %60 = vector.load %arg11[%59, %c0_22] : memref<64x32xf32, #tpu.memory_space<vmem>>, vector<8x32xf32>
    tpu.vector_store %arg11[%59, %c0_22], %58 {strides = array<i32>} : memref<64x32xf32, #tpu.memory_space<vmem>>, vector<8x32xf32>,
    %c2_i32 = arith.constant 2 : i32
    %c8_i32_23 = arith.constant 8 : i32
    %61 = arith.muli %c2_i32, %c8_i32_23 : i32
    %62 = tpu.assume_multiple %61, 8 : i32
    %63 = arith.index_cast %62 : i32 to index
    %c0_24 = arith.constant 0 : index
    %64 = vector.load %arg10[%63, %c0_24] : memref<64x128xf32, #tpu.memory_space<vmem>>, vector<8x128xf32>
    %cst_25 = arith.constant dense<0.000000e+00> : vector<8x128xf32>
    %65 = tpu.matmul %58, %7, %cst_25 {dimension_numbers = #tpu.dot_dimension_numbers<[1], [0], [0], [1], [0, 0, 1, 1], [], []>} : vector<8x32xf32>, vector<32x128xf32>, vector<8x128xf32> -> vector<8x128xf32>
    %66 = arith.addf %64, %65 : vector<8x128xf32>
    %67 = arith.negf %66 : vector<8x128xf32>
    %68 = math.exp %67 : vector<8x128xf32>
    %cst_26 = arith.constant 1.000000e+00 : f32
    %69 = vector.broadcast %cst_26 : f32 to vector<8x128xf32>
    %70 = arith.addf %69, %68 : vector<8x128xf32>
    %71 = arith.divf %69, %70 : vector<8x128xf32>
    %72 = vector.extract_strided_slice %71 {offsets = [0, 0], sizes = [8, 32], strides = [1, 1]} : vector<8x128xf32> to vector<8x32xf32>
    %73 = vector.extract_strided_slice %71 {offsets = [0, 32], sizes = [8, 32], strides = [1, 1]} : vector<8x128xf32> to vector<8x32xf32>
    %74 = vector.extract_strided_slice %71 {offsets = [0, 64], sizes = [8, 32], strides = [1, 1]} : vector<8x128xf32> to vector<8x32xf32>
    %cst_27 = arith.constant 2.000000e+00 : f32
    %75 = vector.broadcast %cst_27 : f32 to vector<8x32xf32>
    %76 = arith.mulf %75, %74 : vector<8x32xf32>
    %cst_28 = arith.constant 1.000000e+00 : f32
    %77 = vector.broadcast %cst_28 : f32 to vector<8x32xf32>
    %78 = arith.subf %76, %77 : vector<8x32xf32>
    %79 = vector.extract_strided_slice %71 {offsets = [0, 96], sizes = [8, 32], strides = [1, 1]} : vector<8x128xf32> to vector<8x32xf32>
    %80 = arith.mulf %73, %56 : vector<8x32xf32>
    %81 = arith.mulf %72, %78 : vector<8x32xf32>
    %82 = arith.addf %80, %81 : vector<8x32xf32>
    %83 = math.tanh %82 : vector<8x32xf32>
    %84 = arith.mulf %79, %83 : vector<8x32xf32>
    %85 = arith.index_cast %62 : i32 to index
    %c0_29 = arith.constant 0 : index
    %86 = vector.load %arg11[%85, %c0_29] : memref<64x32xf32, #tpu.memory_space<vmem>>, vector<8x32xf32>
    tpu.vector_store %arg11[%85, %c0_29], %84 {strides = array<i32>} : memref<64x32xf32, #tpu.memory_space<vmem>>, vector<8x32xf32>,
    %c3_i32 = arith.constant 3 : i32
    %c8_i32_30 = arith.constant 8 : i32
    %87 = arith.muli %c3_i32, %c8_i32_30 : i32
    %88 = tpu.assume_multiple %87, 8 : i32
    %89 = arith.index_cast %88 : i32 to index
    %c0_31 = arith.constant 0 : index
    %90 = vector.load %arg10[%89, %c0_31] : memref<64x128xf32, #tpu.memory_space<vmem>>, vector<8x128xf32>
    %cst_32 = arith.constant dense<0.000000e+00> : vector<8x128xf32>
    %91 = tpu.matmul %84, %7, %cst_32 {dimension_numbers = #tpu.dot_dimension_numbers<[1], [0], [0], [1], [0, 0, 1, 1], [], []>} : vector<8x32xf32>, vector<32x128xf32>, vector<8x128xf32> -> vector<8x128xf32>
    %92 = arith.addf %90, %91 : vector<8x128xf32>
    %93 = arith.negf %92 : vector<8x128xf32>
    %94 = math.exp %93 : vector<8x128xf32>
    %cst_33 = arith.constant 1.000000e+00 : f32
    %95 = vector.broadcast %cst_33 : f32 to vector<8x128xf32>
    %96 = arith.addf %95, %94 : vector<8x128xf32>
    %97 = arith.divf %95, %96 : vector<8x128xf32>
    %98 = vector.extract_strided_slice %97 {offsets = [0, 0], sizes = [8, 32], strides = [1, 1]} : vector<8x128xf32> to vector<8x32xf32>
    %99 = vector.extract_strided_slice %97 {offsets = [0, 32], sizes = [8, 32], strides = [1, 1]} : vector<8x128xf32> to vector<8x32xf32>
    %100 = vector.extract_strided_slice %97 {offsets = [0, 64], sizes = [8, 32], strides = [1, 1]} : vector<8x128xf32> to vector<8x32xf32>
    %cst_34 = arith.constant 2.000000e+00 : f32
    %101 = vector.broadcast %cst_34 : f32 to vector<8x32xf32>
    %102 = arith.mulf %101, %100 : vector<8x32xf32>
    %cst_35 = arith.constant 1.000000e+00 : f32
    %103 = vector.broadcast %cst_35 : f32 to vector<8x32xf32>
    %104 = arith.subf %102, %103 : vector<8x32xf32>
    %105 = vector.extract_strided_slice %97 {offsets = [0, 96], sizes = [8, 32], strides = [1, 1]} : vector<8x128xf32> to vector<8x32xf32>
    %106 = arith.mulf %99, %82 : vector<8x32xf32>
    %107 = arith.mulf %98, %104 : vector<8x32xf32>
    %108 = arith.addf %106, %107 : vector<8x32xf32>
    %109 = math.tanh %108 : vector<8x32xf32>
    %110 = arith.mulf %105, %109 : vector<8x32xf32>
    %111 = arith.index_cast %88 : i32 to index
    %c0_36 = arith.constant 0 : index
    %112 = vector.load %arg11[%111, %c0_36] : memref<64x32xf32, #tpu.memory_space<vmem>>, vector<8x32xf32>
    tpu.vector_store %arg11[%111, %c0_36], %110 {strides = array<i32>} : memref<64x32xf32, #tpu.memory_space<vmem>>, vector<8x32xf32>,
    %c4_i32 = arith.constant 4 : i32
    %c8_i32_37 = arith.constant 8 : i32
    %113 = arith.muli %c4_i32, %c8_i32_37 : i32
    %114 = tpu.assume_multiple %113, 8 : i32
    %115 = arith.index_cast %114 : i32 to index
    %c0_38 = arith.constant 0 : index
    %116 = vector.load %arg10[%115, %c0_38] : memref<64x128xf32, #tpu.memory_space<vmem>>, vector<8x128xf32>
    %cst_39 = arith.constant dense<0.000000e+00> : vector<8x128xf32>
    %117 = tpu.matmul %110, %7, %cst_39 {dimension_numbers = #tpu.dot_dimension_numbers<[1], [0], [0], [1], [0, 0, 1, 1], [], []>} : vector<8x32xf32>, vector<32x128xf32>, vector<8x128xf32> -> vector<8x128xf32>
    %118 = arith.addf %116, %117 : vector<8x128xf32>
    %119 = arith.negf %118 : vector<8x128xf32>
    %120 = math.exp %119 : vector<8x128xf32>
    %cst_40 = arith.constant 1.000000e+00 : f32
    %121 = vector.broadcast %cst_40 : f32 to vector<8x128xf32>
    %122 = arith.addf %121, %120 : vector<8x128xf32>
    %123 = arith.divf %121, %122 : vector<8x128xf32>
    %124 = vector.extract_strided_slice %123 {offsets = [0, 0], sizes = [8, 32], strides = [1, 1]} : vector<8x128xf32> to vector<8x32xf32>
    %125 = vector.extract_strided_slice %123 {offsets = [0, 32], sizes = [8, 32], strides = [1, 1]} : vector<8x128xf32> to vector<8x32xf32>
    %126 = vector.extract_strided_slice %123 {offsets = [0, 64], sizes = [8, 32], strides = [1, 1]} : vector<8x128xf32> to vector<8x32xf32>
    %cst_41 = arith.constant 2.000000e+00 : f32
    %127 = vector.broadcast %cst_41 : f32 to vector<8x32xf32>
    %128 = arith.mulf %127, %126 : vector<8x32xf32>
    %cst_42 = arith.constant 1.000000e+00 : f32
    %129 = vector.broadcast %cst_42 : f32 to vector<8x32xf32>
    %130 = arith.subf %128, %129 : vector<8x32xf32>
    %131 = vector.extract_strided_slice %123 {offsets = [0, 96], sizes = [8, 32], strides = [1, 1]} : vector<8x128xf32> to vector<8x32xf32>
    %132 = arith.mulf %125, %108 : vector<8x32xf32>
    %133 = arith.mulf %124, %130 : vector<8x32xf32>
    %134 = arith.addf %132, %133 : vector<8x32xf32>
    %135 = math.tanh %134 : vector<8x32xf32>
    %136 = arith.mulf %131, %135 : vector<8x32xf32>
    %137 = arith.index_cast %114 : i32 to index
    %c0_43 = arith.constant 0 : index
    %138 = vector.load %arg11[%137, %c0_43] : memref<64x32xf32, #tpu.memory_space<vmem>>, vector<8x32xf32>
    tpu.vector_store %arg11[%137, %c0_43], %136 {strides = array<i32>} : memref<64x32xf32, #tpu.memory_space<vmem>>, vector<8x32xf32>,
    %c5_i32 = arith.constant 5 : i32
    %c8_i32_44 = arith.constant 8 : i32
    %139 = arith.muli %c5_i32, %c8_i32_44 : i32
    %140 = tpu.assume_multiple %139, 8 : i32
    %141 = arith.index_cast %140 : i32 to index
    %c0_45 = arith.constant 0 : index
    %142 = vector.load %arg10[%141, %c0_45] : memref<64x128xf32, #tpu.memory_space<vmem>>, vector<8x128xf32>
    %cst_46 = arith.constant dense<0.000000e+00> : vector<8x128xf32>
    %143 = tpu.matmul %136, %7, %cst_46 {dimension_numbers = #tpu.dot_dimension_numbers<[1], [0], [0], [1], [0, 0, 1, 1], [], []>} : vector<8x32xf32>, vector<32x128xf32>, vector<8x128xf32> -> vector<8x128xf32>
    %144 = arith.addf %142, %143 : vector<8x128xf32>
    %145 = arith.negf %144 : vector<8x128xf32>
    %146 = math.exp %145 : vector<8x128xf32>
    %cst_47 = arith.constant 1.000000e+00 : f32
    %147 = vector.broadcast %cst_47 : f32 to vector<8x128xf32>
    %148 = arith.addf %147, %146 : vector<8x128xf32>
    %149 = arith.divf %147, %148 : vector<8x128xf32>
    %150 = vector.extract_strided_slice %149 {offsets = [0, 0], sizes = [8, 32], strides = [1, 1]} : vector<8x128xf32> to vector<8x32xf32>
    %151 = vector.extract_strided_slice %149 {offsets = [0, 32], sizes = [8, 32], strides = [1, 1]} : vector<8x128xf32> to vector<8x32xf32>
    %152 = vector.extract_strided_slice %149 {offsets = [0, 64], sizes = [8, 32], strides = [1, 1]} : vector<8x128xf32> to vector<8x32xf32>
    %cst_48 = arith.constant 2.000000e+00 : f32
    %153 = vector.broadcast %cst_48 : f32 to vector<8x32xf32>
    %154 = arith.mulf %153, %152 : vector<8x32xf32>
    %cst_49 = arith.constant 1.000000e+00 : f32
    %155 = vector.broadcast %cst_49 : f32 to vector<8x32xf32>
    %156 = arith.subf %154, %155 : vector<8x32xf32>
    %157 = vector.extract_strided_slice %149 {offsets = [0, 96], sizes = [8, 32], strides = [1, 1]} : vector<8x128xf32> to vector<8x32xf32>
    %158 = arith.mulf %151, %134 : vector<8x32xf32>
    %159 = arith.mulf %150, %156 : vector<8x32xf32>
    %160 = arith.addf %158, %159 : vector<8x32xf32>
    %161 = math.tanh %160 : vector<8x32xf32>
    %162 = arith.mulf %157, %161 : vector<8x32xf32>
    %163 = arith.index_cast %140 : i32 to index
    %c0_50 = arith.constant 0 : index
    %164 = vector.load %arg11[%163, %c0_50] : memref<64x32xf32, #tpu.memory_space<vmem>>, vector<8x32xf32>
    tpu.vector_store %arg11[%163, %c0_50], %162 {strides = array<i32>} : memref<64x32xf32, #tpu.memory_space<vmem>>, vector<8x32xf32>,
    %c6_i32 = arith.constant 6 : i32
    %c8_i32_51 = arith.constant 8 : i32
    %165 = arith.muli %c6_i32, %c8_i32_51 : i32
    %166 = tpu.assume_multiple %165, 8 : i32
    %167 = arith.index_cast %166 : i32 to index
    %c0_52 = arith.constant 0 : index
    %168 = vector.load %arg10[%167, %c0_52] : memref<64x128xf32, #tpu.memory_space<vmem>>, vector<8x128xf32>
    %cst_53 = arith.constant dense<0.000000e+00> : vector<8x128xf32>
    %169 = tpu.matmul %162, %7, %cst_53 {dimension_numbers = #tpu.dot_dimension_numbers<[1], [0], [0], [1], [0, 0, 1, 1], [], []>} : vector<8x32xf32>, vector<32x128xf32>, vector<8x128xf32> -> vector<8x128xf32>
    %170 = arith.addf %168, %169 : vector<8x128xf32>
    %171 = arith.negf %170 : vector<8x128xf32>
    %172 = math.exp %171 : vector<8x128xf32>
    %cst_54 = arith.constant 1.000000e+00 : f32
    %173 = vector.broadcast %cst_54 : f32 to vector<8x128xf32>
    %174 = arith.addf %173, %172 : vector<8x128xf32>
    %175 = arith.divf %173, %174 : vector<8x128xf32>
    %176 = vector.extract_strided_slice %175 {offsets = [0, 0], sizes = [8, 32], strides = [1, 1]} : vector<8x128xf32> to vector<8x32xf32>
    %177 = vector.extract_strided_slice %175 {offsets = [0, 32], sizes = [8, 32], strides = [1, 1]} : vector<8x128xf32> to vector<8x32xf32>
    %178 = vector.extract_strided_slice %175 {offsets = [0, 64], sizes = [8, 32], strides = [1, 1]} : vector<8x128xf32> to vector<8x32xf32>
    %cst_55 = arith.constant 2.000000e+00 : f32
    %179 = vector.broadcast %cst_55 : f32 to vector<8x32xf32>
    %180 = arith.mulf %179, %178 : vector<8x32xf32>
    %cst_56 = arith.constant 1.000000e+00 : f32
    %181 = vector.broadcast %cst_56 : f32 to vector<8x32xf32>
    %182 = arith.subf %180, %181 : vector<8x32xf32>
    %183 = vector.extract_strided_slice %175 {offsets = [0, 96], sizes = [8, 32], strides = [1, 1]} : vector<8x128xf32> to vector<8x32xf32>
    %184 = arith.mulf %177, %160 : vector<8x32xf32>
    %185 = arith.mulf %176, %182 : vector<8x32xf32>
    %186 = arith.addf %184, %185 : vector<8x32xf32>
    %187 = math.tanh %186 : vector<8x32xf32>
    %188 = arith.mulf %183, %187 : vector<8x32xf32>
    %189 = arith.index_cast %166 : i32 to index
    %c0_57 = arith.constant 0 : index
    %190 = vector.load %arg11[%189, %c0_57] : memref<64x32xf32, #tpu.memory_space<vmem>>, vector<8x32xf32>
    tpu.vector_store %arg11[%189, %c0_57], %188 {strides = array<i32>} : memref<64x32xf32, #tpu.memory_space<vmem>>, vector<8x32xf32>,
    %c7_i32 = arith.constant 7 : i32
    %c8_i32_58 = arith.constant 8 : i32
    %191 = arith.muli %c7_i32, %c8_i32_58 : i32
    %192 = tpu.assume_multiple %191, 8 : i32
    %193 = arith.index_cast %192 : i32 to index
    %c0_59 = arith.constant 0 : index
    %194 = vector.load %arg10[%193, %c0_59] : memref<64x128xf32, #tpu.memory_space<vmem>>, vector<8x128xf32>
    %cst_60 = arith.constant dense<0.000000e+00> : vector<8x128xf32>
    %195 = tpu.matmul %188, %7, %cst_60 {dimension_numbers = #tpu.dot_dimension_numbers<[1], [0], [0], [1], [0, 0, 1, 1], [], []>} : vector<8x32xf32>, vector<32x128xf32>, vector<8x128xf32> -> vector<8x128xf32>
    %196 = arith.addf %194, %195 : vector<8x128xf32>
    %197 = arith.negf %196 : vector<8x128xf32>
    %198 = math.exp %197 : vector<8x128xf32>
    %cst_61 = arith.constant 1.000000e+00 : f32
    %199 = vector.broadcast %cst_61 : f32 to vector<8x128xf32>
    %200 = arith.addf %199, %198 : vector<8x128xf32>
    %201 = arith.divf %199, %200 : vector<8x128xf32>
    %202 = vector.extract_strided_slice %201 {offsets = [0, 0], sizes = [8, 32], strides = [1, 1]} : vector<8x128xf32> to vector<8x32xf32>
    %203 = vector.extract_strided_slice %201 {offsets = [0, 32], sizes = [8, 32], strides = [1, 1]} : vector<8x128xf32> to vector<8x32xf32>
    %204 = vector.extract_strided_slice %201 {offsets = [0, 64], sizes = [8, 32], strides = [1, 1]} : vector<8x128xf32> to vector<8x32xf32>
    %cst_62 = arith.constant 2.000000e+00 : f32
    %205 = vector.broadcast %cst_62 : f32 to vector<8x32xf32>
    %206 = arith.mulf %205, %204 : vector<8x32xf32>
    %cst_63 = arith.constant 1.000000e+00 : f32
    %207 = vector.broadcast %cst_63 : f32 to vector<8x32xf32>
    %208 = arith.subf %206, %207 : vector<8x32xf32>
    %209 = vector.extract_strided_slice %201 {offsets = [0, 96], sizes = [8, 32], strides = [1, 1]} : vector<8x128xf32> to vector<8x32xf32>
    %210 = arith.mulf %203, %186 : vector<8x32xf32>
    %211 = arith.mulf %202, %208 : vector<8x32xf32>
    %212 = arith.addf %210, %211 : vector<8x32xf32>
    %213 = math.tanh %212 : vector<8x32xf32>
    %214 = arith.mulf %209, %213 : vector<8x32xf32>
    %215 = arith.index_cast %192 : i32 to index
    %c0_64 = arith.constant 0 : index
    %216 = vector.load %arg11[%215, %c0_64] : memref<64x32xf32, #tpu.memory_space<vmem>>, vector<8x32xf32>
    tpu.vector_store %arg11[%215, %c0_64], %214 {strides = array<i32>} : memref<64x32xf32, #tpu.memory_space<vmem>>, vector<8x32xf32>,
    %c8_i32_65 = arith.constant 8 : i32
    %c0_66 = arith.constant 0 : index
    %c0_67 = arith.constant 0 : index
    %217 = vector.load %arg11[%c0_66, %c0_67] : memref<64x32xf32, #tpu.memory_space<vmem>>, vector<64x32xf32>
    %c0_68 = arith.constant 0 : index
    %c0_69 = arith.constant 0 : index
    %218 = vector.load %arg4[%c0_68, %c0_69] : memref<32x128xf32, #tpu.memory_space<vmem>>, vector<32x128xf32>
    %cst_70 = arith.constant dense<0.000000e+00> : vector<64x128xf32>
    %219 = tpu.matmul %217, %218, %cst_70 {dimension_numbers = #tpu.dot_dimension_numbers<[1], [0], [0], [1], [0, 0, 1, 1], [], []>} : vector<64x32xf32>, vector<32x128xf32>, vector<64x128xf32> -> vector<64x128xf32>
    %c0_71 = arith.constant 0 : index
    %c0_72 = arith.constant 0 : index
    %220 = vector.load %arg6[%c0_71, %c0_72] : memref<1x128xf32, #tpu.memory_space<vmem>>, vector<1x128xf32>
    %221 = vector.broadcast %220 : vector<1x128xf32> to vector<64x128xf32>
    %222 = arith.addf %219, %221 : vector<64x128xf32>
    %c0_73 = arith.constant 0 : index
    %c0_74 = arith.constant 0 : index
    %223 = vector.load %arg10[%c0_73, %c0_74] : memref<64x128xf32, #tpu.memory_space<vmem>>, vector<64x128xf32>
    tpu.vector_store %arg10[%c0_73, %c0_74], %222 {strides = array<i32>} : memref<64x128xf32, #tpu.memory_space<vmem>>, vector<64x128xf32>,
    %c0_75 = arith.constant 0 : index
    %c0_76 = arith.constant 0 : index
    %224 = vector.load %arg5[%c0_75, %c0_76] : memref<32x128xf32, #tpu.memory_space<vmem>>, vector<32x128xf32>
    %cst_77 = arith.constant 0.000000e+00 : f32
    %225 = vector.broadcast %cst_77 : f32 to vector<8x32xf32>
    %c0_i32_78 = arith.constant 0 : i32
    %c8_i32_79 = arith.constant 8 : i32
    %226 = arith.muli %c0_i32_78, %c8_i32_79 : i32
    %227 = tpu.assume_multiple %226, 8 : i32
    %228 = arith.index_cast %227 : i32 to index
    %c0_80 = arith.constant 0 : index
    %229 = vector.load %arg10[%228, %c0_80] : memref<64x128xf32, #tpu.memory_space<vmem>>, vector<8x128xf32>
    %cst_81 = arith.constant dense<0.000000e+00> : vector<8x128xf32>
    %230 = tpu.matmul %225, %224, %cst_81 {dimension_numbers = #tpu.dot_dimension_numbers<[1], [0], [0], [1], [0, 0, 1, 1], [], []>} : vector<8x32xf32>, vector<32x128xf32>, vector<8x128xf32> -> vector<8x128xf32>
    %231 = arith.addf %229, %230 : vector<8x128xf32>
    %232 = arith.negf %231 : vector<8x128xf32>
    %233 = math.exp %232 : vector<8x128xf32>
    %cst_82 = arith.constant 1.000000e+00 : f32
    %234 = vector.broadcast %cst_82 : f32 to vector<8x128xf32>
    %235 = arith.addf %234, %233 : vector<8x128xf32>
    %236 = arith.divf %234, %235 : vector<8x128xf32>
    %237 = vector.extract_strided_slice %236 {offsets = [0, 0], sizes = [8, 32], strides = [1, 1]} : vector<8x128xf32> to vector<8x32xf32>
    %238 = vector.extract_strided_slice %236 {offsets = [0, 32], sizes = [8, 32], strides = [1, 1]} : vector<8x128xf32> to vector<8x32xf32>
    %239 = vector.extract_strided_slice %236 {offsets = [0, 64], sizes = [8, 32], strides = [1, 1]} : vector<8x128xf32> to vector<8x32xf32>
    %cst_83 = arith.constant 2.000000e+00 : f32
    %240 = vector.broadcast %cst_83 : f32 to vector<8x32xf32>
    %241 = arith.mulf %240, %239 : vector<8x32xf32>
    %cst_84 = arith.constant 1.000000e+00 : f32
    %242 = vector.broadcast %cst_84 : f32 to vector<8x32xf32>
    %243 = arith.subf %241, %242 : vector<8x32xf32>
    %244 = vector.extract_strided_slice %236 {offsets = [0, 96], sizes = [8, 32], strides = [1, 1]} : vector<8x128xf32> to vector<8x32xf32>
    %245 = arith.mulf %238, %225 : vector<8x32xf32>
    %246 = arith.mulf %237, %243 : vector<8x32xf32>
    %247 = arith.addf %245, %246 : vector<8x32xf32>
    %248 = math.tanh %247 : vector<8x32xf32>
    %249 = arith.mulf %244, %248 : vector<8x32xf32>
    %250 = arith.index_cast %227 : i32 to index
    %c0_85 = arith.constant 0 : index
    %251 = vector.load %arg11[%250, %c0_85] : memref<64x32xf32, #tpu.memory_space<vmem>>, vector<8x32xf32>
    tpu.vector_store %arg11[%250, %c0_85], %249 {strides = array<i32>} : memref<64x32xf32, #tpu.memory_space<vmem>>, vector<8x32xf32>,
    %c1_i32_86 = arith.constant 1 : i32
    %c8_i32_87 = arith.constant 8 : i32
    %252 = arith.muli %c1_i32_86, %c8_i32_87 : i32
    %253 = tpu.assume_multiple %252, 8 : i32
    %254 = arith.index_cast %253 : i32 to index
    %c0_88 = arith.constant 0 : index
    %255 = vector.load %arg10[%254, %c0_88] : memref<64x128xf32, #tpu.memory_space<vmem>>, vector<8x128xf32>
    %cst_89 = arith.constant dense<0.000000e+00> : vector<8x128xf32>
    %256 = tpu.matmul %249, %224, %cst_89 {dimension_numbers = #tpu.dot_dimension_numbers<[1], [0], [0], [1], [0, 0, 1, 1], [], []>} : vector<8x32xf32>, vector<32x128xf32>, vector<8x128xf32> -> vector<8x128xf32>
    %257 = arith.addf %255, %256 : vector<8x128xf32>
    %258 = arith.negf %257 : vector<8x128xf32>
    %259 = math.exp %258 : vector<8x128xf32>
    %cst_90 = arith.constant 1.000000e+00 : f32
    %260 = vector.broadcast %cst_90 : f32 to vector<8x128xf32>
    %261 = arith.addf %260, %259 : vector<8x128xf32>
    %262 = arith.divf %260, %261 : vector<8x128xf32>
    %263 = vector.extract_strided_slice %262 {offsets = [0, 0], sizes = [8, 32], strides = [1, 1]} : vector<8x128xf32> to vector<8x32xf32>
    %264 = vector.extract_strided_slice %262 {offsets = [0, 32], sizes = [8, 32], strides = [1, 1]} : vector<8x128xf32> to vector<8x32xf32>
    %265 = vector.extract_strided_slice %262 {offsets = [0, 64], sizes = [8, 32], strides = [1, 1]} : vector<8x128xf32> to vector<8x32xf32>
    %cst_91 = arith.constant 2.000000e+00 : f32
    %266 = vector.broadcast %cst_91 : f32 to vector<8x32xf32>
    %267 = arith.mulf %266, %265 : vector<8x32xf32>
    %cst_92 = arith.constant 1.000000e+00 : f32
    %268 = vector.broadcast %cst_92 : f32 to vector<8x32xf32>
    %269 = arith.subf %267, %268 : vector<8x32xf32>
    %270 = vector.extract_strided_slice %262 {offsets = [0, 96], sizes = [8, 32], strides = [1, 1]} : vector<8x128xf32> to vector<8x32xf32>
    %271 = arith.mulf %264, %247 : vector<8x32xf32>
    %272 = arith.mulf %263, %269 : vector<8x32xf32>
    %273 = arith.addf %271, %272 : vector<8x32xf32>
    %274 = math.tanh %273 : vector<8x32xf32>
    %275 = arith.mulf %270, %274 : vector<8x32xf32>
    %276 = arith.index_cast %253 : i32 to index
    %c0_93 = arith.constant 0 : index
    %277 = vector.load %arg11[%276, %c0_93] : memref<64x32xf32, #tpu.memory_space<vmem>>, vector<8x32xf32>
    tpu.vector_store %arg11[%276, %c0_93], %275 {strides = array<i32>} : memref<64x32xf32, #tpu.memory_space<vmem>>, vector<8x32xf32>,
    %c2_i32_94 = arith.constant 2 : i32
    %c8_i32_95 = arith.constant 8 : i32
    %278 = arith.muli %c2_i32_94, %c8_i32_95 : i32
    %279 = tpu.assume_multiple %278, 8 : i32
    %280 = arith.index_cast %279 : i32 to index
    %c0_96 = arith.constant 0 : index
    %281 = vector.load %arg10[%280, %c0_96] : memref<64x128xf32, #tpu.memory_space<vmem>>, vector<8x128xf32>
    %cst_97 = arith.constant dense<0.000000e+00> : vector<8x128xf32>
    %282 = tpu.matmul %275, %224, %cst_97 {dimension_numbers = #tpu.dot_dimension_numbers<[1], [0], [0], [1], [0, 0, 1, 1], [], []>} : vector<8x32xf32>, vector<32x128xf32>, vector<8x128xf32> -> vector<8x128xf32>
    %283 = arith.addf %281, %282 : vector<8x128xf32>
    %284 = arith.negf %283 : vector<8x128xf32>
    %285 = math.exp %284 : vector<8x128xf32>
    %cst_98 = arith.constant 1.000000e+00 : f32
    %286 = vector.broadcast %cst_98 : f32 to vector<8x128xf32>
    %287 = arith.addf %286, %285 : vector<8x128xf32>
    %288 = arith.divf %286, %287 : vector<8x128xf32>
    %289 = vector.extract_strided_slice %288 {offsets = [0, 0], sizes = [8, 32], strides = [1, 1]} : vector<8x128xf32> to vector<8x32xf32>
    %290 = vector.extract_strided_slice %288 {offsets = [0, 32], sizes = [8, 32], strides = [1, 1]} : vector<8x128xf32> to vector<8x32xf32>
    %291 = vector.extract_strided_slice %288 {offsets = [0, 64], sizes = [8, 32], strides = [1, 1]} : vector<8x128xf32> to vector<8x32xf32>
    %cst_99 = arith.constant 2.000000e+00 : f32
    %292 = vector.broadcast %cst_99 : f32 to vector<8x32xf32>
    %293 = arith.mulf %292, %291 : vector<8x32xf32>
    %cst_100 = arith.constant 1.000000e+00 : f32
    %294 = vector.broadcast %cst_100 : f32 to vector<8x32xf32>
    %295 = arith.subf %293, %294 : vector<8x32xf32>
    %296 = vector.extract_strided_slice %288 {offsets = [0, 96], sizes = [8, 32], strides = [1, 1]} : vector<8x128xf32> to vector<8x32xf32>
    %297 = arith.mulf %290, %273 : vector<8x32xf32>
    %298 = arith.mulf %289, %295 : vector<8x32xf32>
    %299 = arith.addf %297, %298 : vector<8x32xf32>
    %300 = math.tanh %299 : vector<8x32xf32>
    %301 = arith.mulf %296, %300 : vector<8x32xf32>
    %302 = arith.index_cast %279 : i32 to index
    %c0_101 = arith.constant 0 : index
    %303 = vector.load %arg11[%302, %c0_101] : memref<64x32xf32, #tpu.memory_space<vmem>>, vector<8x32xf32>
    tpu.vector_store %arg11[%302, %c0_101], %301 {strides = array<i32>} : memref<64x32xf32, #tpu.memory_space<vmem>>, vector<8x32xf32>,
    %c3_i32_102 = arith.constant 3 : i32
    %c8_i32_103 = arith.constant 8 : i32
    %304 = arith.muli %c3_i32_102, %c8_i32_103 : i32
    %305 = tpu.assume_multiple %304, 8 : i32
    %306 = arith.index_cast %305 : i32 to index
    %c0_104 = arith.constant 0 : index
    %307 = vector.load %arg10[%306, %c0_104] : memref<64x128xf32, #tpu.memory_space<vmem>>, vector<8x128xf32>
    %cst_105 = arith.constant dense<0.000000e+00> : vector<8x128xf32>
    %308 = tpu.matmul %301, %224, %cst_105 {dimension_numbers = #tpu.dot_dimension_numbers<[1], [0], [0], [1], [0, 0, 1, 1], [], []>} : vector<8x32xf32>, vector<32x128xf32>, vector<8x128xf32> -> vector<8x128xf32>
    %309 = arith.addf %307, %308 : vector<8x128xf32>
    %310 = arith.negf %309 : vector<8x128xf32>
    %311 = math.exp %310 : vector<8x128xf32>
    %cst_106 = arith.constant 1.000000e+00 : f32
    %312 = vector.broadcast %cst_106 : f32 to vector<8x128xf32>
    %313 = arith.addf %312, %311 : vector<8x128xf32>
    %314 = arith.divf %312, %313 : vector<8x128xf32>
    %315 = vector.extract_strided_slice %314 {offsets = [0, 0], sizes = [8, 32], strides = [1, 1]} : vector<8x128xf32> to vector<8x32xf32>
    %316 = vector.extract_strided_slice %314 {offsets = [0, 32], sizes = [8, 32], strides = [1, 1]} : vector<8x128xf32> to vector<8x32xf32>
    %317 = vector.extract_strided_slice %314 {offsets = [0, 64], sizes = [8, 32], strides = [1, 1]} : vector<8x128xf32> to vector<8x32xf32>
    %cst_107 = arith.constant 2.000000e+00 : f32
    %318 = vector.broadcast %cst_107 : f32 to vector<8x32xf32>
    %319 = arith.mulf %318, %317 : vector<8x32xf32>
    %cst_108 = arith.constant 1.000000e+00 : f32
    %320 = vector.broadcast %cst_108 : f32 to vector<8x32xf32>
    %321 = arith.subf %319, %320 : vector<8x32xf32>
    %322 = vector.extract_strided_slice %314 {offsets = [0, 96], sizes = [8, 32], strides = [1, 1]} : vector<8x128xf32> to vector<8x32xf32>
    %323 = arith.mulf %316, %299 : vector<8x32xf32>
    %324 = arith.mulf %315, %321 : vector<8x32xf32>
    %325 = arith.addf %323, %324 : vector<8x32xf32>
    %326 = math.tanh %325 : vector<8x32xf32>
    %327 = arith.mulf %322, %326 : vector<8x32xf32>
    %328 = arith.index_cast %305 : i32 to index
    %c0_109 = arith.constant 0 : index
    %329 = vector.load %arg11[%328, %c0_109] : memref<64x32xf32, #tpu.memory_space<vmem>>, vector<8x32xf32>
    tpu.vector_store %arg11[%328, %c0_109], %327 {strides = array<i32>} : memref<64x32xf32, #tpu.memory_space<vmem>>, vector<8x32xf32>,
    %c4_i32_110 = arith.constant 4 : i32
    %c8_i32_111 = arith.constant 8 : i32
    %330 = arith.muli %c4_i32_110, %c8_i32_111 : i32
    %331 = tpu.assume_multiple %330, 8 : i32
    %332 = arith.index_cast %331 : i32 to index
    %c0_112 = arith.constant 0 : index
    %333 = vector.load %arg10[%332, %c0_112] : memref<64x128xf32, #tpu.memory_space<vmem>>, vector<8x128xf32>
    %cst_113 = arith.constant dense<0.000000e+00> : vector<8x128xf32>
    %334 = tpu.matmul %327, %224, %cst_113 {dimension_numbers = #tpu.dot_dimension_numbers<[1], [0], [0], [1], [0, 0, 1, 1], [], []>} : vector<8x32xf32>, vector<32x128xf32>, vector<8x128xf32> -> vector<8x128xf32>
    %335 = arith.addf %333, %334 : vector<8x128xf32>
    %336 = arith.negf %335 : vector<8x128xf32>
    %337 = math.exp %336 : vector<8x128xf32>
    %cst_114 = arith.constant 1.000000e+00 : f32
    %338 = vector.broadcast %cst_114 : f32 to vector<8x128xf32>
    %339 = arith.addf %338, %337 : vector<8x128xf32>
    %340 = arith.divf %338, %339 : vector<8x128xf32>
    %341 = vector.extract_strided_slice %340 {offsets = [0, 0], sizes = [8, 32], strides = [1, 1]} : vector<8x128xf32> to vector<8x32xf32>
    %342 = vector.extract_strided_slice %340 {offsets = [0, 32], sizes = [8, 32], strides = [1, 1]} : vector<8x128xf32> to vector<8x32xf32>
    %343 = vector.extract_strided_slice %340 {offsets = [0, 64], sizes = [8, 32], strides = [1, 1]} : vector<8x128xf32> to vector<8x32xf32>
    %cst_115 = arith.constant 2.000000e+00 : f32
    %344 = vector.broadcast %cst_115 : f32 to vector<8x32xf32>
    %345 = arith.mulf %344, %343 : vector<8x32xf32>
    %cst_116 = arith.constant 1.000000e+00 : f32
    %346 = vector.broadcast %cst_116 : f32 to vector<8x32xf32>
    %347 = arith.subf %345, %346 : vector<8x32xf32>
    %348 = vector.extract_strided_slice %340 {offsets = [0, 96], sizes = [8, 32], strides = [1, 1]} : vector<8x128xf32> to vector<8x32xf32>
    %349 = arith.mulf %342, %325 : vector<8x32xf32>
    %350 = arith.mulf %341, %347 : vector<8x32xf32>
    %351 = arith.addf %349, %350 : vector<8x32xf32>
    %352 = math.tanh %351 : vector<8x32xf32>
    %353 = arith.mulf %348, %352 : vector<8x32xf32>
    %354 = arith.index_cast %331 : i32 to index
    %c0_117 = arith.constant 0 : index
    %355 = vector.load %arg11[%354, %c0_117] : memref<64x32xf32, #tpu.memory_space<vmem>>, vector<8x32xf32>
    tpu.vector_store %arg11[%354, %c0_117], %353 {strides = array<i32>} : memref<64x32xf32, #tpu.memory_space<vmem>>, vector<8x32xf32>,
    %c5_i32_118 = arith.constant 5 : i32
    %c8_i32_119 = arith.constant 8 : i32
    %356 = arith.muli %c5_i32_118, %c8_i32_119 : i32
    %357 = tpu.assume_multiple %356, 8 : i32
    %358 = arith.index_cast %357 : i32 to index
    %c0_120 = arith.constant 0 : index
    %359 = vector.load %arg10[%358, %c0_120] : memref<64x128xf32, #tpu.memory_space<vmem>>, vector<8x128xf32>
    %cst_121 = arith.constant dense<0.000000e+00> : vector<8x128xf32>
    %360 = tpu.matmul %353, %224, %cst_121 {dimension_numbers = #tpu.dot_dimension_numbers<[1], [0], [0], [1], [0, 0, 1, 1], [], []>} : vector<8x32xf32>, vector<32x128xf32>, vector<8x128xf32> -> vector<8x128xf32>
    %361 = arith.addf %359, %360 : vector<8x128xf32>
    %362 = arith.negf %361 : vector<8x128xf32>
    %363 = math.exp %362 : vector<8x128xf32>
    %cst_122 = arith.constant 1.000000e+00 : f32
    %364 = vector.broadcast %cst_122 : f32 to vector<8x128xf32>
    %365 = arith.addf %364, %363 : vector<8x128xf32>
    %366 = arith.divf %364, %365 : vector<8x128xf32>
    %367 = vector.extract_strided_slice %366 {offsets = [0, 0], sizes = [8, 32], strides = [1, 1]} : vector<8x128xf32> to vector<8x32xf32>
    %368 = vector.extract_strided_slice %366 {offsets = [0, 32], sizes = [8, 32], strides = [1, 1]} : vector<8x128xf32> to vector<8x32xf32>
    %369 = vector.extract_strided_slice %366 {offsets = [0, 64], sizes = [8, 32], strides = [1, 1]} : vector<8x128xf32> to vector<8x32xf32>
    %cst_123 = arith.constant 2.000000e+00 : f32
    %370 = vector.broadcast %cst_123 : f32 to vector<8x32xf32>
    %371 = arith.mulf %370, %369 : vector<8x32xf32>
    %cst_124 = arith.constant 1.000000e+00 : f32
    %372 = vector.broadcast %cst_124 : f32 to vector<8x32xf32>
    %373 = arith.subf %371, %372 : vector<8x32xf32>
    %374 = vector.extract_strided_slice %366 {offsets = [0, 96], sizes = [8, 32], strides = [1, 1]} : vector<8x128xf32> to vector<8x32xf32>
    %375 = arith.mulf %368, %351 : vector<8x32xf32>
    %376 = arith.mulf %367, %373 : vector<8x32xf32>
    %377 = arith.addf %375, %376 : vector<8x32xf32>
    %378 = math.tanh %377 : vector<8x32xf32>
    %379 = arith.mulf %374, %378 : vector<8x32xf32>
    %380 = arith.index_cast %357 : i32 to index
    %c0_125 = arith.constant 0 : index
    %381 = vector.load %arg11[%380, %c0_125] : memref<64x32xf32, #tpu.memory_space<vmem>>, vector<8x32xf32>
    tpu.vector_store %arg11[%380, %c0_125], %379 {strides = array<i32>} : memref<64x32xf32, #tpu.memory_space<vmem>>, vector<8x32xf32>,
    %c6_i32_126 = arith.constant 6 : i32
    %c8_i32_127 = arith.constant 8 : i32
    %382 = arith.muli %c6_i32_126, %c8_i32_127 : i32
    %383 = tpu.assume_multiple %382, 8 : i32
    %384 = arith.index_cast %383 : i32 to index
    %c0_128 = arith.constant 0 : index
    %385 = vector.load %arg10[%384, %c0_128] : memref<64x128xf32, #tpu.memory_space<vmem>>, vector<8x128xf32>
    %cst_129 = arith.constant dense<0.000000e+00> : vector<8x128xf32>
    %386 = tpu.matmul %379, %224, %cst_129 {dimension_numbers = #tpu.dot_dimension_numbers<[1], [0], [0], [1], [0, 0, 1, 1], [], []>} : vector<8x32xf32>, vector<32x128xf32>, vector<8x128xf32> -> vector<8x128xf32>
    %387 = arith.addf %385, %386 : vector<8x128xf32>
    %388 = arith.negf %387 : vector<8x128xf32>
    %389 = math.exp %388 : vector<8x128xf32>
    %cst_130 = arith.constant 1.000000e+00 : f32
    %390 = vector.broadcast %cst_130 : f32 to vector<8x128xf32>
    %391 = arith.addf %390, %389 : vector<8x128xf32>
    %392 = arith.divf %390, %391 : vector<8x128xf32>
    %393 = vector.extract_strided_slice %392 {offsets = [0, 0], sizes = [8, 32], strides = [1, 1]} : vector<8x128xf32> to vector<8x32xf32>
    %394 = vector.extract_strided_slice %392 {offsets = [0, 32], sizes = [8, 32], strides = [1, 1]} : vector<8x128xf32> to vector<8x32xf32>
    %395 = vector.extract_strided_slice %392 {offsets = [0, 64], sizes = [8, 32], strides = [1, 1]} : vector<8x128xf32> to vector<8x32xf32>
    %cst_131 = arith.constant 2.000000e+00 : f32
    %396 = vector.broadcast %cst_131 : f32 to vector<8x32xf32>
    %397 = arith.mulf %396, %395 : vector<8x32xf32>
    %cst_132 = arith.constant 1.000000e+00 : f32
    %398 = vector.broadcast %cst_132 : f32 to vector<8x32xf32>
    %399 = arith.subf %397, %398 : vector<8x32xf32>
    %400 = vector.extract_strided_slice %392 {offsets = [0, 96], sizes = [8, 32], strides = [1, 1]} : vector<8x128xf32> to vector<8x32xf32>
    %401 = arith.mulf %394, %377 : vector<8x32xf32>
    %402 = arith.mulf %393, %399 : vector<8x32xf32>
    %403 = arith.addf %401, %402 : vector<8x32xf32>
    %404 = math.tanh %403 : vector<8x32xf32>
    %405 = arith.mulf %400, %404 : vector<8x32xf32>
    %406 = arith.index_cast %383 : i32 to index
    %c0_133 = arith.constant 0 : index
    %407 = vector.load %arg11[%406, %c0_133] : memref<64x32xf32, #tpu.memory_space<vmem>>, vector<8x32xf32>
    tpu.vector_store %arg11[%406, %c0_133], %405 {strides = array<i32>} : memref<64x32xf32, #tpu.memory_space<vmem>>, vector<8x32xf32>,
    %c7_i32_134 = arith.constant 7 : i32
    %c8_i32_135 = arith.constant 8 : i32
    %408 = arith.muli %c7_i32_134, %c8_i32_135 : i32
    %409 = tpu.assume_multiple %408, 8 : i32
    %410 = arith.index_cast %409 : i32 to index
    %c0_136 = arith.constant 0 : index
    %411 = vector.load %arg10[%410, %c0_136] : memref<64x128xf32, #tpu.memory_space<vmem>>, vector<8x128xf32>
    %cst_137 = arith.constant dense<0.000000e+00> : vector<8x128xf32>
    %412 = tpu.matmul %405, %224, %cst_137 {dimension_numbers = #tpu.dot_dimension_numbers<[1], [0], [0], [1], [0, 0, 1, 1], [], []>} : vector<8x32xf32>, vector<32x128xf32>, vector<8x128xf32> -> vector<8x128xf32>
    %413 = arith.addf %411, %412 : vector<8x128xf32>
    %414 = arith.negf %413 : vector<8x128xf32>
    %415 = math.exp %414 : vector<8x128xf32>
    %cst_138 = arith.constant 1.000000e+00 : f32
    %416 = vector.broadcast %cst_138 : f32 to vector<8x128xf32>
    %417 = arith.addf %416, %415 : vector<8x128xf32>
    %418 = arith.divf %416, %417 : vector<8x128xf32>
    %419 = vector.extract_strided_slice %418 {offsets = [0, 0], sizes = [8, 32], strides = [1, 1]} : vector<8x128xf32> to vector<8x32xf32>
    %420 = vector.extract_strided_slice %418 {offsets = [0, 32], sizes = [8, 32], strides = [1, 1]} : vector<8x128xf32> to vector<8x32xf32>
    %421 = vector.extract_strided_slice %418 {offsets = [0, 64], sizes = [8, 32], strides = [1, 1]} : vector<8x128xf32> to vector<8x32xf32>
    %cst_139 = arith.constant 2.000000e+00 : f32
    %422 = vector.broadcast %cst_139 : f32 to vector<8x32xf32>
    %423 = arith.mulf %422, %421 : vector<8x32xf32>
    %cst_140 = arith.constant 1.000000e+00 : f32
    %424 = vector.broadcast %cst_140 : f32 to vector<8x32xf32>
    %425 = arith.subf %423, %424 : vector<8x32xf32>
    %426 = vector.extract_strided_slice %418 {offsets = [0, 96], sizes = [8, 32], strides = [1, 1]} : vector<8x128xf32> to vector<8x32xf32>
    %427 = arith.mulf %420, %403 : vector<8x32xf32>
    %428 = arith.mulf %419, %425 : vector<8x32xf32>
    %429 = arith.addf %427, %428 : vector<8x32xf32>
    %430 = math.tanh %429 : vector<8x32xf32>
    %431 = arith.mulf %426, %430 : vector<8x32xf32>
    %432 = arith.index_cast %409 : i32 to index
    %c0_141 = arith.constant 0 : index
    %433 = vector.load %arg11[%432, %c0_141] : memref<64x32xf32, #tpu.memory_space<vmem>>, vector<8x32xf32>
    tpu.vector_store %arg11[%432, %c0_141], %431 {strides = array<i32>} : memref<64x32xf32, #tpu.memory_space<vmem>>, vector<8x32xf32>,
    %c8_i32_142 = arith.constant 8 : i32
    %c0_143 = arith.constant 0 : index
    %c0_144 = arith.constant 0 : index
    %434 = vector.load %arg11[%c0_143, %c0_144] : memref<64x32xf32, #tpu.memory_space<vmem>>, vector<64x32xf32>
    %c0_145 = arith.constant 0 : index
    %c0_146 = arith.constant 0 : index
    %435 = vector.load %arg7[%c0_145, %c0_146] : memref<32x1xf32, #tpu.memory_space<vmem>>, vector<32x1xf32>
    %cst_147 = arith.constant dense<0.000000e+00> : vector<64x1xf32>
    %436 = tpu.matmul %434, %435, %cst_147 {dimension_numbers = #tpu.dot_dimension_numbers<[1], [0], [0], [1], [0, 0, 1, 1], [], []>} : vector<64x32xf32>, vector<32x1xf32>, vector<64x1xf32> -> vector<64x1xf32>
    %c0_148 = arith.constant 0 : index
    %c0_149 = arith.constant 0 : index
    %437 = vector.load %arg8[%c0_148, %c0_149] : memref<1x1xf32, #tpu.memory_space<vmem>>, vector<1x1xf32>
    %438 = vector.broadcast %437 : vector<1x1xf32> to vector<64x1xf32>
    %439 = arith.addf %436, %438 : vector<64x1xf32>
    %c0_150 = arith.constant 0 : index
    %c0_151 = arith.constant 0 : index
    %440 = vector.load %arg9[%c0_150, %c0_151] : memref<64x1xf32, #tpu.memory_space<vmem>>, vector<64x1xf32>
    tpu.vector_store %arg9[%c0_150, %c0_151], %439 {strides = array<i32>} : memref<64x1xf32, #tpu.memory_space<vmem>>, vector<64x1xf32>,
    return
  }
}

</mosaic_0001>

<llo_original>
// kernel: lstm_module_forward.1
$region0: #{lstm_module_forward.1}
  #allocation0 [shape = 'u32[]', space=smem, size = 0x4, offset = 0x4, fixed_abs, tag = 'smem constant byte address 0x4 - core index']
  #allocation1 [shape = 'u32[144,128]{1,0:T(1,128)}', space=vmem, size = 0x12000, scoped, tag = 'internal scratch']
  #allocation2 [shape = 'f32[64,128]{1,0:T(8,128)}', space=vmem, size = 0x8000, scoped, tag = 'scratch operand']
  #allocation3 [shape = 'f32[64,32]{1,0:T(8,128)}', space=vmem, size = 0x8000, scoped, tag = 'scratch operand']
  #allocation4 [shape = 'f32[1,1]{1,0:T(1,128)S(1)}', space=vmem, size = 0x200, scoped, tag = 'scoped memory for lstm_module_forward.1']
  %s0 = inlined_call_operand.vmem [shape: f32[64,16], index: 0, kind: input, shape index: {}]
  %s1 = inlined_call_operand.vmem [shape: f32[16,128], index: 1, kind: input, shape index: {}]
  %s2 = inlined_call_operand.vmem [shape: f32[32,128], index: 2, kind: input, shape index: {}]
  %s3 = inlined_call_operand.vmem [shape: f32[1,128], index: 3, kind: input, shape index: {}]
  %s4 = inlined_call_operand.vmem [shape: f32[32,128], index: 4, kind: input, shape index: {}]
  %s5 = inlined_call_operand.vmem [shape: f32[32,128], index: 5, kind: input, shape index: {}]
  %s6 = inlined_call_operand.vmem [shape: f32[1,128], index: 6, kind: input, shape index: {}]
  %s7 = inlined_call_operand.vmem [shape: f32[32,1], index: 7, kind: input, shape index: {}]
  %s8 = inlined_call_operand.<no memory space> [shape: f32[1,1], index: 8, kind: input, shape index: {}]
  %s9 = inlined_call_operand.vmem [shape: f32[64,1], index: 9, kind: output, shape index: {}]
  %s10 = sld [smem:[#allocation0]]
  $region46: #{lstm_module_forward.1} parent=0
    _
  %s12 = ssub.s32 1, %s10
  %s13 = scalar_select 0, %s12, %s10
  %v14 = vstv %s8
  %15 = vst [vmem:[#allocation4] sm:$0x1] %v14
  // Predicated region
  $region2: #{lstm_module_forward.1} parent=0 // pred_check
    _
  $region3: #{lstm_module_forward.1} parent=0 // pred_check_branch
    %17 = sbr.rel (0) target = $region5
  $region4: #{lstm_module_forward.1} parent=0 // pred_region
    _
  $region5: #{lstm_module_forward.1} parent=0 // pred_fallthru
    _
  // Predicated region
  $region6: #{lstm_module_forward.1} parent=0 // pred_check
    _
  $region7: #{lstm_module_forward.1} parent=0 // pred_check_branch
    %19 = sbr.rel (0) target = $region9
  $region8: #{lstm_module_forward.1} parent=0 // pred_region
    _
  $region9: #{lstm_module_forward.1} parent=0 // pred_fallthru
    _
  // Predicated region
  $region10: #{lstm_module_forward.1} parent=0 // pred_check
    _
  $region11: #{lstm_module_forward.1} parent=0 // pred_check_branch
    %21 = sbr.rel (0) target = $region13
  $region12: #{lstm_module_forward.1} parent=0 // pred_region
    _
  $region13: #{lstm_module_forward.1} parent=0 // pred_fallthru
    _
  // Predicated region
  $region14: #{lstm_module_forward.1} parent=0 // pred_check
    _
  $region15: #{lstm_module_forward.1} parent=0 // pred_check_branch
    %23 = sbr.rel (0) target = $region17
  $region16: #{lstm_module_forward.1} parent=0 // pred_region
    _
  $region17: #{lstm_module_forward.1} parent=0 // pred_fallthru
    _
  // Predicated region
  $region18: #{lstm_module_forward.1} parent=0 // pred_check
    _
  $region19: #{lstm_module_forward.1} parent=0 // pred_check_branch
    %25 = sbr.rel (0) target = $region21
  $region20: #{lstm_module_forward.1} parent=0 // pred_region
    _
  $region21: #{lstm_module_forward.1} parent=0 // pred_fallthru
    _
  // Predicated region
  $region22: #{lstm_module_forward.1} parent=0 // pred_check
    _
  $region23: #{lstm_module_forward.1} parent=0 // pred_check_branch
    %27 = sbr.rel (0) target = $region25
  $region24: #{lstm_module_forward.1} parent=0 // pred_region
    _
  $region25: #{lstm_module_forward.1} parent=0 // pred_fallthru
    _
  // Predicated region
  $region26: #{lstm_module_forward.1} parent=0 // pred_check
    _
  $region27: #{lstm_module_forward.1} parent=0 // pred_check_branch
    %29 = sbr.rel (0) target = $region29
  $region28: #{lstm_module_forward.1} parent=0 // pred_region
    _
  $region29: #{lstm_module_forward.1} parent=0 // pred_fallthru
    _
  // Predicated region
  $region30: #{lstm_module_forward.1} parent=0 // pred_check
    _
  $region31: #{lstm_module_forward.1} parent=0 // pred_check_branch
    %31 = sbr.rel (0) target = $region33
  $region32: #{lstm_module_forward.1} parent=0 // pred_region
    _
  $region33: #{lstm_module_forward.1} parent=0 // pred_fallthru
    _
  // Predicated region
  $region34: #{lstm_module_forward.1} parent=0 // pred_check
    _
  $region35: #{lstm_module_forward.1} parent=0 // pred_check_branch
    %33 = sbr.rel (0) target = $region37
  $region36: #{lstm_module_forward.1} parent=0 // pred_region
    _
  $region37: #{lstm_module_forward.1} parent=0 // pred_fallthru
    _
  %v34 = vld [vmem:[%s0] sm:$0xff]
  %v35 = vld [vmem:[%s0 + $0x8] sm:$0xff]
  %v36 = vld [vmem:[%s0 + $0x10] sm:$0xff]
  %v37 = vld [vmem:[%s0 + $0x18] sm:$0xff]
  %v38 = vld [vmem:[%s0 + $0x20] sm:$0xff]
  %v39 = vld [vmem:[%s0 + $0x28] sm:$0xff]
  %v40 = vld [vmem:[%s0 + $0x30] sm:$0xff]
  %v41 = vld [vmem:[%s0 + $0x38] sm:$0xff]
  %v42 = vld [vmem:[%s1] sm:$0xff]
  %v43 = vld [vmem:[%s1 + $0x8] sm:$0xff]
  %v44 = vld [vmem:[%s3] sm:$0x1]
  %v46 = vlaneseq
  %v47 = vshrl.u32 %v46, 7
  %v48 = vsub.s32 0, %v47
  %v49 = vrot.slane %v44, %v48
  %vm51 = vcmask 130048
  %v53 = vsel %vm51, %v34, 0
  %v56 = vsel %vm51, %v35, 0
  %v59 = vsel %vm51, %v36, 0
  %v62 = vsel %vm51, %v37, 0
  %v65 = vsel %vm51, %v38, 0
  %v68 = vsel %vm51, %v39, 0
  %v71 = vsel %vm51, %v40, 0
  %v74 = vsel %vm51, %v41, 0
  %76 = vmatprep.subr.mxu0 0.0
  %77 = vmatpush1.msra.mxu0 %v42
  %78 = vmatprep.subr.mxu0 0.0
  %79 = vmatpush1.msra.mxu0 %v43
  %80 = vmatprep.subr.mxu0 0.0
  %81 = vmatpush1.msra.mxu0 0.0
  %82 = vmatprep.subr.mxu0 0.0
  %83 = vmatpush1.msra.mxu0 0.0
  %84 = vmatprep.subr.mxu0 0.0
  %85 = vmatpush1.msra.mxu0 0.0
  %86 = vmatprep.subr.mxu0 0.0
  %87 = vmatpush1.msra.mxu0 0.0
  %88 = vmatprep.subr.mxu0 0.0
  %89 = vmatpush1.msra.mxu0 0.0
  %90 = vmatprep.subr.mxu0 0.0
  %91 = vmatpush1.msra.mxu0 0.0
  %92 = vmatprep.subr.mxu0 0.0
  %93 = vmatpush1.msra.mxu0 0.0
  %94 = vmatprep.subr.mxu0 0.0
  %95 = vmatpush1.msra.mxu0 0.0
  %96 = vmatprep.subr.mxu0 0.0
  %97 = vmatpush1.msra.mxu0 0.0
  %98 = vmatprep.subr.mxu0 0.0
  %99 = vmatpush1.msra.mxu0 0.0
  %100 = vmatprep.subr.mxu0 0.0
  %101 = vmatpush1.msra.mxu0 0.0
  %102 = vmatprep.subr.mxu0 0.0
  %103 = vmatpush1.msra.mxu0 0.0
  %104 = vmatprep.subr.mxu0 0.0
  %105 = vmatpush1.msra.mxu0 0.0
  %106 = vmatprep.subr.mxu0 0.0
  %107 = vmatpush1.msra.mxu0 0.0
  %108 = vmatprep.subr.mxu0 0.0
  %109 = vmatpush1.msra.mxu0 0.0
  %110 = vmatprep.subr.mxu0 0.0
  %111 = vmatpush1.msra.mxu0 0.0
  %112 = vmatprep.subr.mxu0 0.0
  %113 = vmatpush1.msra.mxu0 0.0
  %114 = vmatprep.subr.mxu0 0.0
  %115 = vmatpush1.msra.mxu0 0.0
  %116 = vmatprep.subr.mxu0 0.0
  %117 = vmatpush1.msra.mxu0 0.0
  %118 = vmatprep.subr.mxu0 0.0
  %119 = vmatpush1.msra.mxu0 0.0
  %120 = vmatprep.subr.mxu0 0.0
  %121 = vmatpush1.msra.mxu0 0.0
  %122 = vmatprep.subr.mxu0 0.0
  %123 = vmatpush1.msra.mxu0 0.0
  %124 = vmatprep.subr.mxu0 0.0
  %125 = vmatpush1.msra.mxu0 0.0
  %126 = vmatprep.subr.mxu0 0.0
  %127 = vmatpush1.msra.mxu0 0.0
  %128 = vmatprep.subr.mxu0 0.0
  %129 = vmatpush1.msra.mxu0 0.0
  %130 = vmatprep.subr.mxu0 0.0
  %131 = vmatpush1.msra.mxu0 0.0
  %132 = vmatprep.subr.mxu0 0.0
  %133 = vmatpush1.msra.mxu0 0.0
  %134 = vmatprep.subr.mxu0 0.0
  %135 = vmatpush1.msra.mxu0 0.0
  %136 = vmatprep.subr.mxu0 0.0
  %137 = vmatpush1.msra.mxu0 0.0
  %138 = vmatprep.subr.mxu0 0.0
  %139 = vmatpush1.msra.mxu0 0.0
  %140 = vmatprep.mubr.f32.mxu0 0.0
  %141 = vmatmul.mubr.f32.gmra.mrb[0].mxu0 %v53
  %v142 = vpop.f32.mrb[0].mxu0
  %v143 = vadd.f32 %v49, %v142
  %v144 = vpop.f32.mrb[0].mxu0
  %145 = vmatprep.mubr.f32.mxu0 0.0
  %146 = vmatmul.mubr.f32.gmra.mrb[0].mxu0 %v56
  %v147 = vpop.f32.mrb[0].mxu0
  %v148 = vadd.f32 %v49, %v147
  %v149 = vpop.f32.mrb[0].mxu0
  %150 = vmatprep.mubr.f32.mxu0 0.0
  %151 = vmatmul.mubr.f32.gmra.mrb[0].mxu0 %v59
  %v152 = vpop.f32.mrb[0].mxu0
  %v153 = vadd.f32 %v49, %v152
  %v154 = vpop.f32.mrb[0].mxu0
  %155 = vmatprep.mubr.f32.mxu0 0.0
  %156 = vmatmul.mubr.f32.gmra.mrb[0].mxu0 %v62
  %v157 = vpop.f32.mrb[0].mxu0
  %v158 = vadd.f32 %v49, %v157
  %v159 = vpop.f32.mrb[0].mxu0
  %160 = vmatprep.mubr.f32.mxu0 0.0
  %161 = vmatmul.mubr.f32.gmra.mrb[0].mxu0 %v65
  %v162 = vpop.f32.mrb[0].mxu0
  %v163 = vadd.f32 %v49, %v162
  %v164 = vpop.f32.mrb[0].mxu0
  %165 = vmatprep.mubr.f32.mxu0 0.0
  %166 = vmatmul.mubr.f32.gmra.mrb[0].mxu0 %v68
  %v167 = vpop.f32.mrb[0].mxu0
  %v168 = vadd.f32 %v49, %v167
  %v169 = vpop.f32.mrb[0].mxu0
  %170 = vmatprep.mubr.f32.mxu0 0.0
  %171 = vmatmul.mubr.f32.gmra.mrb[0].mxu0 %v71
  %v172 = vpop.f32.mrb[0].mxu0
  %v173 = vadd.f32 %v49, %v172
  %v174 = vpop.f32.mrb[0].mxu0
  %175 = vmatprep.mubr.f32.mxu0 0.0
  %176 = vmatmul.mubr.f32.gmra.mrb[0].mxu0 %v74
  %v177 = vpop.f32.mrb[0].mxu0
  %v178 = vadd.f32 %v49, %v177
  %v179 = vpop.f32.mrb[0].mxu0
  %180 = vdwg.mxu0
  %181 = vst [vmem:[#allocation2] sm:$0xff] %v143
  %182 = vst [vmem:[#allocation2 + $0x8] sm:$0xff] %v148
  %183 = vst [vmem:[#allocation2 + $0x10] sm:$0xff] %v153
  %184 = vst [vmem:[#allocation2 + $0x18] sm:$0xff] %v158
  %185 = vst [vmem:[#allocation2 + $0x20] sm:$0xff] %v163
  %186 = vst [vmem:[#allocation2 + $0x28] sm:$0xff] %v168
  %187 = vst [vmem:[#allocation2 + $0x30] sm:$0xff] %v173
  %188 = vst [vmem:[#allocation2 + $0x38] sm:$0xff] %v178
  %v189 = vld [vmem:[%s2] sm:$0xff]
  %v190 = vld [vmem:[%s2 + $0x8] sm:$0xff]
  %v191 = vld [vmem:[%s2 + $0x10] sm:$0xff]
  %v192 = vld [vmem:[%s2 + $0x18] sm:$0xff]
  %v193 = vld [vmem:[#allocation2] sm:$0xff]
  %vm194 = vcmask 261120
  %v196 = vsel %vm194, 0.0, 0
  %198 = vmatprep.subr.mxu0 0.0
  %199 = vmatpush1.msra.mxu0 %v189
  %200 = vmatprep.subr.mxu0 0.0
  %201 = vmatpush1.msra.mxu0 %v190
  %202 = vmatprep.subr.mxu0 0.0
  %203 = vmatpush1.msra.mxu0 %v191
  %204 = vmatprep.subr.mxu0 0.0
  %205 = vmatpush1.msra.mxu0 %v192
  %206 = vmatprep.subr.mxu0 0.0
  %207 = vmatpush1.msra.mxu0 0.0
  %208 = vmatprep.subr.mxu0 0.0
  %209 = vmatpush1.msra.mxu0 0.0
  %210 = vmatprep.subr.mxu0 0.0
  %211 = vmatpush1.msra.mxu0 0.0
  %212 = vmatprep.subr.mxu0 0.0
  %213 = vmatpush1.msra.mxu0 0.0
  %214 = vmatprep.subr.mxu0 0.0
  %215 = vmatpush1.msra.mxu0 0.0
  %216 = vmatprep.subr.mxu0 0.0
  %217 = vmatpush1.msra.mxu0 0.0
  %218 = vmatprep.subr.mxu0 0.0
  %219 = vmatpush1.msra.mxu0 0.0
  %220 = vmatprep.subr.mxu0 0.0
  %221 = vmatpush1.msra.mxu0 0.0
  %222 = vmatprep.subr.mxu0 0.0
  %223 = vmatpush1.msra.mxu0 0.0
  %224 = vmatprep.subr.mxu0 0.0
  %225 = vmatpush1.msra.mxu0 0.0
  %226 = vmatprep.subr.mxu0 0.0
  %227 = vmatpush1.msra.mxu0 0.0
  %228 = vmatprep.subr.mxu0 0.0
  %229 = vmatpush1.msra.mxu0 0.0
  %230 = vmatprep.subr.mxu0 0.0
  %231 = vmatpush1.msra.mxu0 0.0
  %232 = vmatprep.subr.mxu0 0.0
  %233 = vmatpush1.msra.mxu0 0.0
  %234 = vmatprep.subr.mxu0 0.0
  %235 = vmatpush1.msra.mxu0 0.0
  %236 = vmatprep.subr.mxu0 0.0
  %237 = vmatpush1.msra.mxu0 0.0
  %238 = vmatprep.subr.mxu0 0.0
  %239 = vmatpush1.msra.mxu0 0.0
  %240 = vmatprep.subr.mxu0 0.0
  %241 = vmatpush1.msra.mxu0 0.0
  %242 = vmatprep.subr.mxu0 0.0
  %243 = vmatpush1.msra.mxu0 0.0
  %244 = vmatprep.subr.mxu0 0.0
  %245 = vmatpush1.msra.mxu0 0.0
  %246 = vmatprep.subr.mxu0 0.0
  %247 = vmatpush1.msra.mxu0 0.0
  %248 = vmatprep.subr.mxu0 0.0
  %249 = vmatpush1.msra.mxu0 0.0
  %250 = vmatprep.subr.mxu0 0.0
  %251 = vmatpush1.msra.mxu0 0.0
  %252 = vmatprep.subr.mxu0 0.0
  %253 = vmatpush1.msra.mxu0 0.0
  %254 = vmatprep.subr.mxu0 0.0
  %255 = vmatpush1.msra.mxu0 0.0
  %256 = vmatprep.subr.mxu0 0.0
  %257 = vmatpush1.msra.mxu0 0.0
  %258 = vmatprep.subr.mxu0 0.0
  %259 = vmatpush1.msra.mxu0 0.0
  %260 = vmatprep.subr.mxu0 0.0
  %261 = vmatpush1.msra.mxu0 0.0
  %262 = vmatprep.mubr.f32.mxu0 0.0
  %263 = vmatmul.mubr.f32.gmra.mrb[0].mxu0 %v196
  %v264 = vpop.f32.mrb[0].mxu0
  %v265 = vadd.f32 0.0, %v264
  %v266 = vpop.f32.mrb[0].mxu0
  %267 = vdwg.mxu0
  %v268 = vadd.f32 %v193, %v265
  %v269 = vxor.u32 %v268, 2147483648
  %v270 = vmul.f32 %v269, 1.442695
  %v271 = vpow.pop %v270
  %v272 = vadd.f32 %v271, 1.0
  %v273 = vrcp.pop %v272
  %v274 = vmul.f32 1.0, %v273
  %v275 = vmul.f32 %v274, 2.0
  %v276 = vsub.f32 %v275, 1.0
  %v277 = vmul.f32 %v274, 0.0
  %279 = vrot.lane.b32.xlu0 %v276, 64
  %v280 = vpop.permute.xlu0 %279
  %v282 = vmul.f32 %v274, %v280
  %284 = vrot.lane.b32.xlu0 %v282, 32
  %v285 = vpop.permute.xlu0 %284
  %v287 = vadd.f32 %v277, %v285
  %v288 = vtanh.pop %v287
  %290 = vrot.lane.b32.xlu0 %v288, 64
  %v291 = vpop.permute.xlu0 %290
  %v293 = vmul.f32 %v274, %v291
  %295 = vrot.lane.b32.xlu0 %v293, 32
  %v296 = vpop.permute.xlu0 %295
  %298 = vst.msk [vmem:[#allocation3] sm:$0xff] %vm194, %v296
  %s299 = scalar_lea.vmem [#allocation2], 8
  %v300 = vld [vmem:[%s299] sm:$0xff]
  %v301 = vsel %vm194, %v296, 0
  %303 = vmatprep.subr.mxu0 0.0
  %304 = vmatpush1.msra.mxu0 %v189
  %305 = vmatprep.subr.mxu0 0.0
  %306 = vmatpush1.msra.mxu0 %v190
  %307 = vmatprep.subr.mxu0 0.0
  %308 = vmatpush1.msra.mxu0 %v191
  %309 = vmatprep.subr.mxu0 0.0
  %310 = vmatpush1.msra.mxu0 %v192
  %311 = vmatprep.subr.mxu0 0.0
  %312 = vmatpush1.msra.mxu0 0.0
  %313 = vmatprep.subr.mxu0 0.0
  %314 = vmatpush1.msra.mxu0 0.0
  %315 = vmatprep.subr.mxu0 0.0
  %316 = vmatpush1.msra.mxu0 0.0
  %317 = vmatprep.subr.mxu0 0.0
  %318 = vmatpush1.msra.mxu0 0.0
  %319 = vmatprep.subr.mxu0 0.0
  %320 = vmatpush1.msra.mxu0 0.0
  %321 = vmatprep.subr.mxu0 0.0
  %322 = vmatpush1.msra.mxu0 0.0
  %323 = vmatprep.subr.mxu0 0.0
  %324 = vmatpush1.msra.mxu0 0.0
  %325 = vmatprep.subr.mxu0 0.0
  %326 = vmatpush1.msra.mxu0 0.0
  %327 = vmatprep.subr.mxu0 0.0
  %328 = vmatpush1.msra.mxu0 0.0
  %329 = vmatprep.subr.mxu0 0.0
  %330 = vmatpush1.msra.mxu0 0.0
  %331 = vmatprep.subr.mxu0 0.0
  %332 = vmatpush1.msra.mxu0 0.0
  %333 = vmatprep.subr.mxu0 0.0
  %334 = vmatpush1.msra.mxu0 0.0
  %335 = vmatprep.subr.mxu0 0.0
  %336 = vmatpush1.msra.mxu0 0.0
  %337 = vmatprep.subr.mxu0 0.0
  %338 = vmatpush1.msra.mxu0 0.0
  %339 = vmatprep.subr.mxu0 0.0
  %340 = vmatpush1.msra.mxu0 0.0
  %341 = vmatprep.subr.mxu0 0.0
  %342 = vmatpush1.msra.mxu0 0.0
  %343 = vmatprep.subr.mxu0 0.0
  %344 = vmatpush1.msra.mxu0 0.0
  %345 = vmatprep.subr.mxu0 0.0
  %346 = vmatpush1.msra.mxu0 0.0
  %347 = vmatprep.subr.mxu0 0.0
  %348 = vmatpush1.msra.mxu0 0.0
  %349 = vmatprep.subr.mxu0 0.0
  %350 = vmatpush1.msra.mxu0 0.0
  %351 = vmatprep.subr.mxu0 0.0
  %352 = vmatpush1.msra.mxu0 0.0
  %353 = vmatprep.subr.mxu0 0.0
  %354 = vmatpush1.msra.mxu0 0.0
  %355 = vmatprep.subr.mxu0 0.0
  %356 = vmatpush1.msra.mxu0 0.0
  %357 = vmatprep.subr.mxu0 0.0
  %358 = vmatpush1.msra.mxu0 0.0
  %359 = vmatprep.subr.mxu0 0.0
  %360 = vmatpush1.msra.mxu0 0.0
  %361 = vmatprep.subr.mxu0 0.0
  %362 = vmatpush1.msra.mxu0 0.0
  %363 = vmatprep.subr.mxu0 0.0
  %364 = vmatpush1.msra.mxu0 0.0
  %365 = vmatprep.subr.mxu0 0.0
  %366 = vmatpush1.msra.mxu0 0.0
  %367 = vmatprep.mubr.f32.mxu0 0.0
  %368 = vmatmul.mubr.f32.gmra.mrb[0].mxu0 %v301
  %v369 = vpop.f32.mrb[0].mxu0
  %v370 = vadd.f32 0.0, %v369
  %v371 = vpop.f32.mrb[0].mxu0
  %372 = vdwg.mxu0
  %v373 = vadd.f32 %v300, %v370
  %v374 = vxor.u32 %v373, 2147483648
  %v375 = vmul.f32 %v374, 1.442695
  %v376 = vpow.pop %v375
  %v377 = vadd.f32 %v376, 1.0
  %v378 = vrcp.pop %v377
  %v379 = vmul.f32 1.0, %v378
  %v380 = vmul.f32 %v379, 2.0
  %v381 = vsub.f32 %v380, 1.0
  %v382 = vmul.f32 %v379, %v287
  %384 = vrot.lane.b32.xlu0 %v381, 64
  %v385 = vpop.permute.xlu0 %384
  %v387 = vmul.f32 %v379, %v385
  %389 = vrot.lane.b32.xlu0 %v387, 32
  %v390 = vpop.permute.xlu0 %389
  %v392 = vadd.f32 %v382, %v390
  %v393 = vtanh.pop %v392
  %395 = vrot.lane.b32.xlu0 %v393, 64
  %v396 = vpop.permute.xlu0 %395
  %v398 = vmul.f32 %v379, %v396
  %400 = vrot.lane.b32.xlu0 %v398, 32
  %v401 = vpop.permute.xlu0 %400
  %s403 = scalar_lea.vmem [#allocation3], 8
  %404 = vst.msk [vmem:[%s403] sm:$0xff] %vm194, %v401
  %s405 = scalar_lea.vmem [#allocation2], 16
  %v406 = vld [vmem:[%s405] sm:$0xff]
  %v407 = vsel %vm194, %v401, 0
  %409 = vmatprep.subr.mxu0 0.0
  %410 = vmatpush1.msra.mxu0 %v189
  %411 = vmatprep.subr.mxu0 0.0
  %412 = vmatpush1.msra.mxu0 %v190
  %413 = vmatprep.subr.mxu0 0.0
  %414 = vmatpush1.msra.mxu0 %v191
  %415 = vmatprep.subr.mxu0 0.0
  %416 = vmatpush1.msra.mxu0 %v192
  %417 = vmatprep.subr.mxu0 0.0
  %418 = vmatpush1.msra.mxu0 0.0
  %419 = vmatprep.subr.mxu0 0.0
  %420 = vmatpush1.msra.mxu0 0.0
  %421 = vmatprep.subr.mxu0 0.0
  %422 = vmatpush1.msra.mxu0 0.0
  %423 = vmatprep.subr.mxu0 0.0
  %424 = vmatpush1.msra.mxu0 0.0
  %425 = vmatprep.subr.mxu0 0.0
  %426 = vmatpush1.msra.mxu0 0.0
  %427 = vmatprep.subr.mxu0 0.0
  %428 = vmatpush1.msra.mxu0 0.0
  %429 = vmatprep.subr.mxu0 0.0
  %430 = vmatpush1.msra.mxu0 0.0
  %431 = vmatprep.subr.mxu0 0.0
  %432 = vmatpush1.msra.mxu0 0.0
  %433 = vmatprep.subr.mxu0 0.0
  %434 = vmatpush1.msra.mxu0 0.0
  %435 = vmatprep.subr.mxu0 0.0
  %436 = vmatpush1.msra.mxu0 0.0
  %437 = vmatprep.subr.mxu0 0.0
  %438 = vmatpush1.msra.mxu0 0.0
  %439 = vmatprep.subr.mxu0 0.0
  %440 = vmatpush1.msra.mxu0 0.0
  %441 = vmatprep.subr.mxu0 0.0
  %442 = vmatpush1.msra.mxu0 0.0
  %443 = vmatprep.subr.mxu0 0.0
  %444 = vmatpush1.msra.mxu0 0.0
  %445 = vmatprep.subr.mxu0 0.0
  %446 = vmatpush1.msra.mxu0 0.0
  %447 = vmatprep.subr.mxu0 0.0
  %448 = vmatpush1.msra.mxu0 0.0
  %449 = vmatprep.subr.mxu0 0.0
  %450 = vmatpush1.msra.mxu0 0.0
  %451 = vmatprep.subr.mxu0 0.0
  %452 = vmatpush1.msra.mxu0 0.0
  %453 = vmatprep.subr.mxu0 0.0
  %454 = vmatpush1.msra.mxu0 0.0
  %455 = vmatprep.subr.mxu0 0.0
  %456 = vmatpush1.msra.mxu0 0.0
  %457 = vmatprep.subr.mxu0 0.0
  %458 = vmatpush1.msra.mxu0 0.0
  %459 = vmatprep.subr.mxu0 0.0
  %460 = vmatpush1.msra.mxu0 0.0
  %461 = vmatprep.subr.mxu0 0.0
  %462 = vmatpush1.msra.mxu0 0.0
  %463 = vmatprep.subr.mxu0 0.0
  %464 = vmatpush1.msra.mxu0 0.0
  %465 = vmatprep.subr.mxu0 0.0
  %466 = vmatpush1.msra.mxu0 0.0
  %467 = vmatprep.subr.mxu0 0.0
  %468 = vmatpush1.msra.mxu0 0.0
  %469 = vmatprep.subr.mxu0 0.0
  %470 = vmatpush1.msra.mxu0 0.0
  %471 = vmatprep.subr.mxu0 0.0
  %472 = vmatpush1.msra.mxu0 0.0
  %473 = vmatprep.mubr.f32.mxu0 0.0
  %474 = vmatmul.mubr.f32.gmra.mrb[0].mxu0 %v407
  %v475 = vpop.f32.mrb[0].mxu0
  %v476 = vadd.f32 0.0, %v475
  %v477 = vpop.f32.mrb[0].mxu0
  %478 = vdwg.mxu0
  %v479 = vadd.f32 %v406, %v476
  %v480 = vxor.u32 %v479, 2147483648
  %v481 = vmul.f32 %v480, 1.442695
  %v482 = vpow.pop %v481
  %v483 = vadd.f32 %v482, 1.0
  %v484 = vrcp.pop %v483
  %v485 = vmul.f32 1.0, %v484
  %v486 = vmul.f32 %v485, 2.0
  %v487 = vsub.f32 %v486, 1.0
  %v488 = vmul.f32 %v485, %v392
  %490 = vrot.lane.b32.xlu0 %v487, 64
  %v491 = vpop.permute.xlu0 %490
  %v493 = vmul.f32 %v485, %v491
  %495 = vrot.lane.b32.xlu0 %v493, 32
  %v496 = vpop.permute.xlu0 %495
  %v498 = vadd.f32 %v488, %v496
  %v499 = vtanh.pop %v498
  %501 = vrot.lane.b32.xlu0 %v499, 64
  %v502 = vpop.permute.xlu0 %501
  %v504 = vmul.f32 %v485, %v502
  %506 = vrot.lane.b32.xlu0 %v504, 32
  %v507 = vpop.permute.xlu0 %506
  %s509 = scalar_lea.vmem [#allocation3], 16
  %510 = vst.msk [vmem:[%s509] sm:$0xff] %vm194, %v507
  %s511 = scalar_lea.vmem [#allocation2], 24
  %v512 = vld [vmem:[%s511] sm:$0xff]
  %v513 = vsel %vm194, %v507, 0
  %515 = vmatprep.subr.mxu0 0.0
  %516 = vmatpush1.msra.mxu0 %v189
  %517 = vmatprep.subr.mxu0 0.0
  %518 = vmatpush1.msra.mxu0 %v190
  %519 = vmatprep.subr.mxu0 0.0
  %520 = vmatpush1.msra.mxu0 %v191
  %521 = vmatprep.subr.mxu0 0.0
  %522 = vmatpush1.msra.mxu0 %v192
  %523 = vmatprep.subr.mxu0 0.0
  %524 = vmatpush1.msra.mxu0 0.0
  %525 = vmatprep.subr.mxu0 0.0
  %526 = vmatpush1.msra.mxu0 0.0
  %527 = vmatprep.subr.mxu0 0.0
  %528 = vmatpush1.msra.mxu0 0.0
  %529 = vmatprep.subr.mxu0 0.0
  %530 = vmatpush1.msra.mxu0 0.0
  %531 = vmatprep.subr.mxu0 0.0
  %532 = vmatpush1.msra.mxu0 0.0
  %533 = vmatprep.subr.mxu0 0.0
  %534 = vmatpush1.msra.mxu0 0.0
  %535 = vmatprep.subr.mxu0 0.0
  %536 = vmatpush1.msra.mxu0 0.0
  %537 = vmatprep.subr.mxu0 0.0
  %538 = vmatpush1.msra.mxu0 0.0
  %539 = vmatprep.subr.mxu0 0.0
  %540 = vmatpush1.msra.mxu0 0.0
  %541 = vmatprep.subr.mxu0 0.0
  %542 = vmatpush1.msra.mxu0 0.0
  %543 = vmatprep.subr.mxu0 0.0
  %544 = vmatpush1.msra.mxu0 0.0
  %545 = vmatprep.subr.mxu0 0.0
  %546 = vmatpush1.msra.mxu0 0.0
  %547 = vmatprep.subr.mxu0 0.0
  %548 = vmatpush1.msra.mxu0 0.0
  %549 = vmatprep.subr.mxu0 0.0
  %550 = vmatpush1.msra.mxu0 0.0
  %551 = vmatprep.subr.mxu0 0.0
  %552 = vmatpush1.msra.mxu0 0.0
  %553 = vmatprep.subr.mxu0 0.0
  %554 = vmatpush1.msra.mxu0 0.0
  %555 = vmatprep.subr.mxu0 0.0
  %556 = vmatpush1.msra.mxu0 0.0
  %557 = vmatprep.subr.mxu0 0.0
  %558 = vmatpush1.msra.mxu0 0.0
  %559 = vmatprep.subr.mxu0 0.0
  %560 = vmatpush1.msra.mxu0 0.0
  %561 = vmatprep.subr.mxu0 0.0
  %562 = vmatpush1.msra.mxu0 0.0
  %563 = vmatprep.subr.mxu0 0.0
  %564 = vmatpush1.msra.mxu0 0.0
  %565 = vmatprep.subr.mxu0 0.0
  %566 = vmatpush1.msra.mxu0 0.0
  %567 = vmatprep.subr.mxu0 0.0
  %568 = vmatpush1.msra.mxu0 0.0
  %569 = vmatprep.subr.mxu0 0.0
  %570 = vmatpush1.msra.mxu0 0.0
  %571 = vmatprep.subr.mxu0 0.0
  %572 = vmatpush1.msra.mxu0 0.0
  %573 = vmatprep.subr.mxu0 0.0
  %574 = vmatpush1.msra.mxu0 0.0
  %575 = vmatprep.subr.mxu0 0.0
  %576 = vmatpush1.msra.mxu0 0.0
  %577 = vmatprep.subr.mxu0 0.0
  %578 = vmatpush1.msra.mxu0 0.0
  %579 = vmatprep.mubr.f32.mxu0 0.0
  %580 = vmatmul.mubr.f32.gmra.mrb[0].mxu0 %v513
  %v581 = vpop.f32.mrb[0].mxu0
  %v582 = vadd.f32 0.0, %v581
  %v583 = vpop.f32.mrb[0].mxu0
  %584 = vdwg.mxu0
  %v585 = vadd.f32 %v512, %v582
  %v586 = vxor.u32 %v585, 2147483648
  %v587 = vmul.f32 %v586, 1.442695
  %v588 = vpow.pop %v587
  %v589 = vadd.f32 %v588, 1.0
  %v590 = vrcp.pop %v589
  %v591 = vmul.f32 1.0, %v590
  %v592 = vmul.f32 %v591, 2.0
  %v593 = vsub.f32 %v592, 1.0
  %v594 = vmul.f32 %v591, %v498
  %596 = vrot.lane.b32.xlu0 %v593, 64
  %v597 = vpop.permute.xlu0 %596
  %v599 = vmul.f32 %v591, %v597
  %601 = vrot.lane.b32.xlu0 %v599, 32
  %v602 = vpop.permute.xlu0 %601
  %v604 = vadd.f32 %v594, %v602
  %v605 = vtanh.pop %v604
  %607 = vrot.lane.b32.xlu0 %v605, 64
  %v608 = vpop.permute.xlu0 %607
  %v610 = vmul.f32 %v591, %v608
  %612 = vrot.lane.b32.xlu0 %v610, 32
  %v613 = vpop.permute.xlu0 %612
  %s615 = scalar_lea.vmem [#allocation3], 24
  %616 = vst.msk [vmem:[%s615] sm:$0xff] %vm194, %v613
  %s617 = scalar_lea.vmem [#allocation2], 32
  %v618 = vld [vmem:[%s617] sm:$0xff]
  %v619 = vsel %vm194, %v613, 0
  %621 = vmatprep.subr.mxu0 0.0
  %622 = vmatpush1.msra.mxu0 %v189
  %623 = vmatprep.subr.mxu0 0.0
  %624 = vmatpush1.msra.mxu0 %v190
  %625 = vmatprep.subr.mxu0 0.0
  %626 = vmatpush1.msra.mxu0 %v191
  %627 = vmatprep.subr.mxu0 0.0
  %628 = vmatpush1.msra.mxu0 %v192
  %629 = vmatprep.subr.mxu0 0.0
  %630 = vmatpush1.msra.mxu0 0.0
  %631 = vmatprep.subr.mxu0 0.0
  %632 = vmatpush1.msra.mxu0 0.0
  %633 = vmatprep.subr.mxu0 0.0
  %634 = vmatpush1.msra.mxu0 0.0
  %635 = vmatprep.subr.mxu0 0.0
  %636 = vmatpush1.msra.mxu0 0.0
  %637 = vmatprep.subr.mxu0 0.0
  %638 = vmatpush1.msra.mxu0 0.0
  %639 = vmatprep.subr.mxu0 0.0
  %640 = vmatpush1.msra.mxu0 0.0
  %641 = vmatprep.subr.mxu0 0.0
  %642 = vmatpush1.msra.mxu0 0.0
  %643 = vmatprep.subr.mxu0 0.0
  %644 = vmatpush1.msra.mxu0 0.0
  %645 = vmatprep.subr.mxu0 0.0
  %646 = vmatpush1.msra.mxu0 0.0
  %647 = vmatprep.subr.mxu0 0.0
  %648 = vmatpush1.msra.mxu0 0.0
  %649 = vmatprep.subr.mxu0 0.0
  %650 = vmatpush1.msra.mxu0 0.0
  %651 = vmatprep.subr.mxu0 0.0
  %652 = vmatpush1.msra.mxu0 0.0
  %653 = vmatprep.subr.mxu0 0.0
  %654 = vmatpush1.msra.mxu0 0.0
  %655 = vmatprep.subr.mxu0 0.0
  %656 = vmatpush1.msra.mxu0 0.0
  %657 = vmatprep.subr.mxu0 0.0
  %658 = vmatpush1.msra.mxu0 0.0
  %659 = vmatprep.subr.mxu0 0.0
  %660 = vmatpush1.msra.mxu0 0.0
  %661 = vmatprep.subr.mxu0 0.0
  %662 = vmatpush1.msra.mxu0 0.0
  %663 = vmatprep.subr.mxu0 0.0
  %664 = vmatpush1.msra.mxu0 0.0
  %665 = vmatprep.subr.mxu0 0.0
  %666 = vmatpush1.msra.mxu0 0.0
  %667 = vmatprep.subr.mxu0 0.0
  %668 = vmatpush1.msra.mxu0 0.0
  %669 = vmatprep.subr.mxu0 0.0
  %670 = vmatpush1.msra.mxu0 0.0
  %671 = vmatprep.subr.mxu0 0.0
  %672 = vmatpush1.msra.mxu0 0.0
  %673 = vmatprep.subr.mxu0 0.0
  %674 = vmatpush1.msra.mxu0 0.0
  %675 = vmatprep.subr.mxu0 0.0
  %676 = vmatpush1.msra.mxu0 0.0
  %677 = vmatprep.subr.mxu0 0.0
  %678 = vmatpush1.msra.mxu0 0.0
  %679 = vmatprep.subr.mxu0 0.0
  %680 = vmatpush1.msra.mxu0 0.0
  %681 = vmatprep.subr.mxu0 0.0
  %682 = vmatpush1.msra.mxu0 0.0
  %683 = vmatprep.subr.mxu0 0.0
  %684 = vmatpush1.msra.mxu0 0.0
  %685 = vmatprep.mubr.f32.mxu0 0.0
  %686 = vmatmul.mubr.f32.gmra.mrb[0].mxu0 %v619
  %v687 = vpop.f32.mrb[0].mxu0
  %v688 = vadd.f32 0.0, %v687
  %v689 = vpop.f32.mrb[0].mxu0
  %690 = vdwg.mxu0
  %v691 = vadd.f32 %v618, %v688
  %v692 = vxor.u32 %v691, 2147483648
  %v693 = vmul.f32 %v692, 1.442695
  %v694 = vpow.pop %v693
  %v695 = vadd.f32 %v694, 1.0
  %v696 = vrcp.pop %v695
  %v697 = vmul.f32 1.0, %v696
  %v698 = vmul.f32 %v697, 2.0
  %v699 = vsub.f32 %v698, 1.0
  %v700 = vmul.f32 %v697, %v604
  %702 = vrot.lane.b32.xlu0 %v699, 64
  %v703 = vpop.permute.xlu0 %702
  %v705 = vmul.f32 %v697, %v703
  %707 = vrot.lane.b32.xlu0 %v705, 32
  %v708 = vpop.permute.xlu0 %707
  %v710 = vadd.f32 %v700, %v708
  %v711 = vtanh.pop %v710
  %713 = vrot.lane.b32.xlu0 %v711, 64
  %v714 = vpop.permute.xlu0 %713
  %v716 = vmul.f32 %v697, %v714
  %718 = vrot.lane.b32.xlu0 %v716, 32
  %v719 = vpop.permute.xlu0 %718
  %s721 = scalar_lea.vmem [#allocation3], 32
  %722 = vst.msk [vmem:[%s721] sm:$0xff] %vm194, %v719
  %s723 = scalar_lea.vmem [#allocation2], 40
  %v724 = vld [vmem:[%s723] sm:$0xff]
  %v725 = vsel %vm194, %v719, 0
  %727 = vmatprep.subr.mxu0 0.0
  %728 = vmatpush1.msra.mxu0 %v189
  %729 = vmatprep.subr.mxu0 0.0
  %730 = vmatpush1.msra.mxu0 %v190
  %731 = vmatprep.subr.mxu0 0.0
  %732 = vmatpush1.msra.mxu0 %v191
  %733 = vmatprep.subr.mxu0 0.0
  %734 = vmatpush1.msra.mxu0 %v192
  %735 = vmatprep.subr.mxu0 0.0
  %736 = vmatpush1.msra.mxu0 0.0
  %737 = vmatprep.subr.mxu0 0.0
  %738 = vmatpush1.msra.mxu0 0.0
  %739 = vmatprep.subr.mxu0 0.0
  %740 = vmatpush1.msra.mxu0 0.0
  %741 = vmatprep.subr.mxu0 0.0
  %742 = vmatpush1.msra.mxu0 0.0
  %743 = vmatprep.subr.mxu0 0.0
  %744 = vmatpush1.msra.mxu0 0.0
  %745 = vmatprep.subr.mxu0 0.0
  %746 = vmatpush1.msra.mxu0 0.0
  %747 = vmatprep.subr.mxu0 0.0
  %748 = vmatpush1.msra.mxu0 0.0
  %749 = vmatprep.subr.mxu0 0.0
  %750 = vmatpush1.msra.mxu0 0.0
  %751 = vmatprep.subr.mxu0 0.0
  %752 = vmatpush1.msra.mxu0 0.0
  %753 = vmatprep.subr.mxu0 0.0
  %754 = vmatpush1.msra.mxu0 0.0
  %755 = vmatprep.subr.mxu0 0.0
  %756 = vmatpush1.msra.mxu0 0.0
  %757 = vmatprep.subr.mxu0 0.0
  %758 = vmatpush1.msra.mxu0 0.0
  %759 = vmatprep.subr.mxu0 0.0
  %760 = vmatpush1.msra.mxu0 0.0
  %761 = vmatprep.subr.mxu0 0.0
  %762 = vmatpush1.msra.mxu0 0.0
  %763 = vmatprep.subr.mxu0 0.0
  %764 = vmatpush1.msra.mxu0 0.0
  %765 = vmatprep.subr.mxu0 0.0
  %766 = vmatpush1.msra.mxu0 0.0
  %767 = vmatprep.subr.mxu0 0.0
  %768 = vmatpush1.msra.mxu0 0.0
  %769 = vmatprep.subr.mxu0 0.0
  %770 = vmatpush1.msra.mxu0 0.0
  %771 = vmatprep.subr.mxu0 0.0
  %772 = vmatpush1.msra.mxu0 0.0
  %773 = vmatprep.subr.mxu0 0.0
  %774 = vmatpush1.msra.mxu0 0.0
  %775 = vmatprep.subr.mxu0 0.0
  %776 = vmatpush1.msra.mxu0 0.0
  %777 = vmatprep.subr.mxu0 0.0
  %778 = vmatpush1.msra.mxu0 0.0
  %779 = vmatprep.subr.mxu0 0.0
  %780 = vmatpush1.msra.mxu0 0.0
  %781 = vmatprep.subr.mxu0 0.0
  %782 = vmatpush1.msra.mxu0 0.0
  %783 = vmatprep.subr.mxu0 0.0
  %784 = vmatpush1.msra.mxu0 0.0
  %785 = vmatprep.subr.mxu0 0.0
  %786 = vmatpush1.msra.mxu0 0.0
  %787 = vmatprep.subr.mxu0 0.0
  %788 = vmatpush1.msra.mxu0 0.0
  %789 = vmatprep.subr.mxu0 0.0
  %790 = vmatpush1.msra.mxu0 0.0
  %791 = vmatprep.mubr.f32.mxu0 0.0
  %792 = vmatmul.mubr.f32.gmra.mrb[0].mxu0 %v725
  %v793 = vpop.f32.mrb[0].mxu0
  %v794 = vadd.f32 0.0, %v793
  %v795 = vpop.f32.mrb[0].mxu0
  %796 = vdwg.mxu0
  %v797 = vadd.f32 %v724, %v794
  %v798 = vxor.u32 %v797, 2147483648
  %v799 = vmul.f32 %v798, 1.442695
  %v800 = vpow.pop %v799
  %v801 = vadd.f32 %v800, 1.0
  %v802 = vrcp.pop %v801
  %v803 = vmul.f32 1.0, %v802
  %v804 = vmul.f32 %v803, 2.0
  %v805 = vsub.f32 %v804, 1.0
  %v806 = vmul.f32 %v803, %v710
  %808 = vrot.lane.b32.xlu0 %v805, 64
  %v809 = vpop.permute.xlu0 %808
  %v811 = vmul.f32 %v803, %v809
  %813 = vrot.lane.b32.xlu0 %v811, 32
  %v814 = vpop.permute.xlu0 %813
  %v816 = vadd.f32 %v806, %v814
  %v817 = vtanh.pop %v816
  %819 = vrot.lane.b32.xlu0 %v817, 64
  %v820 = vpop.permute.xlu0 %819
  %v822 = vmul.f32 %v803, %v820
  %824 = vrot.lane.b32.xlu0 %v822, 32
  %v825 = vpop.permute.xlu0 %824
  %s827 = scalar_lea.vmem [#allocation3], 40
  %828 = vst.msk [vmem:[%s827] sm:$0xff] %vm194, %v825
  %s829 = scalar_lea.vmem [#allocation2], 48
  %v830 = vld [vmem:[%s829] sm:$0xff]
  %v831 = vsel %vm194, %v825, 0
  %833 = vmatprep.subr.mxu0 0.0
  %834 = vmatpush1.msra.mxu0 %v189
  %835 = vmatprep.subr.mxu0 0.0
  %836 = vmatpush1.msra.mxu0 %v190
  %837 = vmatprep.subr.mxu0 0.0
  %838 = vmatpush1.msra.mxu0 %v191
  %839 = vmatprep.subr.mxu0 0.0
  %840 = vmatpush1.msra.mxu0 %v192
  %841 = vmatprep.subr.mxu0 0.0
  %842 = vmatpush1.msra.mxu0 0.0
  %843 = vmatprep.subr.mxu0 0.0
  %844 = vmatpush1.msra.mxu0 0.0
  %845 = vmatprep.subr.mxu0 0.0
  %846 = vmatpush1.msra.mxu0 0.0
  %847 = vmatprep.subr.mxu0 0.0
  %848 = vmatpush1.msra.mxu0 0.0
  %849 = vmatprep.subr.mxu0 0.0
  %850 = vmatpush1.msra.mxu0 0.0
  %851 = vmatprep.subr.mxu0 0.0
  %852 = vmatpush1.msra.mxu0 0.0
  %853 = vmatprep.subr.mxu0 0.0
  %854 = vmatpush1.msra.mxu0 0.0
  %855 = vmatprep.subr.mxu0 0.0
  %856 = vmatpush1.msra.mxu0 0.0
  %857 = vmatprep.subr.mxu0 0.0
  %858 = vmatpush1.msra.mxu0 0.0
  %859 = vmatprep.subr.mxu0 0.0
  %860 = vmatpush1.msra.mxu0 0.0
  %861 = vmatprep.subr.mxu0 0.0
  %862 = vmatpush1.msra.mxu0 0.0
  %863 = vmatprep.subr.mxu0 0.0
  %864 = vmatpush1.msra.mxu0 0.0
  %865 = vmatprep.subr.mxu0 0.0
  %866 = vmatpush1.msra.mxu0 0.0
  %867 = vmatprep.subr.mxu0 0.0
  %868 = vmatpush1.msra.mxu0 0.0
  %869 = vmatprep.subr.mxu0 0.0
  %870 = vmatpush1.msra.mxu0 0.0
  %871 = vmatprep.subr.mxu0 0.0
  %872 = vmatpush1.msra.mxu0 0.0
  %873 = vmatprep.subr.mxu0 0.0
  %874 = vmatpush1.msra.mxu0 0.0
  %875 = vmatprep.subr.mxu0 0.0
  %876 = vmatpush1.msra.mxu0 0.0
  %877 = vmatprep.subr.mxu0 0.0
  %878 = vmatpush1.msra.mxu0 0.0
  %879 = vmatprep.subr.mxu0 0.0
  %880 = vmatpush1.msra.mxu0 0.0
  %881 = vmatprep.subr.mxu0 0.0
  %882 = vmatpush1.msra.mxu0 0.0
  %883 = vmatprep.subr.mxu0 0.0
  %884 = vmatpush1.msra.mxu0 0.0
  %885 = vmatprep.subr.mxu0 0.0
  %886 = vmatpush1.msra.mxu0 0.0
  %887 = vmatprep.subr.mxu0 0.0
  %888 = vmatpush1.msra.mxu0 0.0
  %889 = vmatprep.subr.mxu0 0.0
  %890 = vmatpush1.msra.mxu0 0.0
  %891 = vmatprep.subr.mxu0 0.0
  %892 = vmatpush1.msra.mxu0 0.0
  %893 = vmatprep.subr.mxu0 0.0
  %894 = vmatpush1.msra.mxu0 0.0
  %895 = vmatprep.subr.mxu0 0.0
  %896 = vmatpush1.msra.mxu0 0.0
  %897 = vmatprep.mubr.f32.mxu0 0.0
  %898 = vmatmul.mubr.f32.gmra.mrb[0].mxu0 %v831
  %v899 = vpop.f32.mrb[0].mxu0
  %v900 = vadd.f32 0.0, %v899
  %v901 = vpop.f32.mrb[0].mxu0
  %902 = vdwg.mxu0
  %v903 = vadd.f32 %v830, %v900
  %v904 = vxor.u32 %v903, 2147483648
  %v905 = vmul.f32 %v904, 1.442695
  %v906 = vpow.pop %v905
  %v907 = vadd.f32 %v906, 1.0
  %v908 = vrcp.pop %v907
  %v909 = vmul.f32 1.0, %v908
  %v910 = vmul.f32 %v909, 2.0
  %v911 = vsub.f32 %v910, 1.0
  %v912 = vmul.f32 %v909, %v816
  %914 = vrot.lane.b32.xlu0 %v911, 64
  %v915 = vpop.permute.xlu0 %914
  %v917 = vmul.f32 %v909, %v915
  %919 = vrot.lane.b32.xlu0 %v917, 32
  %v920 = vpop.permute.xlu0 %919
  %v922 = vadd.f32 %v912, %v920
  %v923 = vtanh.pop %v922
  %925 = vrot.lane.b32.xlu0 %v923, 64
  %v926 = vpop.permute.xlu0 %925
  %v928 = vmul.f32 %v909, %v926
  %930 = vrot.lane.b32.xlu0 %v928, 32
  %v931 = vpop.permute.xlu0 %930
  %s933 = scalar_lea.vmem [#allocation3], 48
  %934 = vst.msk [vmem:[%s933] sm:$0xff] %vm194, %v931
  %s935 = scalar_lea.vmem [#allocation2], 56
  %v936 = vld [vmem:[%s935] sm:$0xff]
  %v937 = vsel %vm194, %v931, 0
  %939 = vmatprep.subr.mxu0 0.0
  %940 = vmatpush1.msra.mxu0 %v189
  %941 = vmatprep.subr.mxu0 0.0
  %942 = vmatpush1.msra.mxu0 %v190
  %943 = vmatprep.subr.mxu0 0.0
  %944 = vmatpush1.msra.mxu0 %v191
  %945 = vmatprep.subr.mxu0 0.0
  %946 = vmatpush1.msra.mxu0 %v192
  %947 = vmatprep.subr.mxu0 0.0
  %948 = vmatpush1.msra.mxu0 0.0
  %949 = vmatprep.subr.mxu0 0.0
  %950 = vmatpush1.msra.mxu0 0.0
  %951 = vmatprep.subr.mxu0 0.0
  %952 = vmatpush1.msra.mxu0 0.0
  %953 = vmatprep.subr.mxu0 0.0
  %954 = vmatpush1.msra.mxu0 0.0
  %955 = vmatprep.subr.mxu0 0.0
  %956 = vmatpush1.msra.mxu0 0.0
  %957 = vmatprep.subr.mxu0 0.0
  %958 = vmatpush1.msra.mxu0 0.0
  %959 = vmatprep.subr.mxu0 0.0
  %960 = vmatpush1.msra.mxu0 0.0
  %961 = vmatprep.subr.mxu0 0.0
  %962 = vmatpush1.msra.mxu0 0.0
  %963 = vmatprep.subr.mxu0 0.0
  %964 = vmatpush1.msra.mxu0 0.0
  %965 = vmatprep.subr.mxu0 0.0
  %966 = vmatpush1.msra.mxu0 0.0
  %967 = vmatprep.subr.mxu0 0.0
  %968 = vmatpush1.msra.mxu0 0.0
  %969 = vmatprep.subr.mxu0 0.0
  %970 = vmatpush1.msra.mxu0 0.0
  %971 = vmatprep.subr.mxu0 0.0
  %972 = vmatpush1.msra.mxu0 0.0
  %973 = vmatprep.subr.mxu0 0.0
  %974 = vmatpush1.msra.mxu0 0.0
  %975 = vmatprep.subr.mxu0 0.0
  %976 = vmatpush1.msra.mxu0 0.0
  %977 = vmatprep.subr.mxu0 0.0
  %978 = vmatpush1.msra.mxu0 0.0
  %979 = vmatprep.subr.mxu0 0.0
  %980 = vmatpush1.msra.mxu0 0.0
  %981 = vmatprep.subr.mxu0 0.0
  %982 = vmatpush1.msra.mxu0 0.0
  %983 = vmatprep.subr.mxu0 0.0
  %984 = vmatpush1.msra.mxu0 0.0
  %985 = vmatprep.subr.mxu0 0.0
  %986 = vmatpush1.msra.mxu0 0.0
  %987 = vmatprep.subr.mxu0 0.0
  %988 = vmatpush1.msra.mxu0 0.0
  %989 = vmatprep.subr.mxu0 0.0
  %990 = vmatpush1.msra.mxu0 0.0
  %991 = vmatprep.subr.mxu0 0.0
  %992 = vmatpush1.msra.mxu0 0.0
  %993 = vmatprep.subr.mxu0 0.0
  %994 = vmatpush1.msra.mxu0 0.0
  %995 = vmatprep.subr.mxu0 0.0
  %996 = vmatpush1.msra.mxu0 0.0
  %997 = vmatprep.subr.mxu0 0.0
  %998 = vmatpush1.msra.mxu0 0.0
  %999 = vmatprep.subr.mxu0 0.0
  %1000 = vmatpush1.msra.mxu0 0.0
  %1001 = vmatprep.subr.mxu0 0.0
  %1002 = vmatpush1.msra.mxu0 0.0
  %1003 = vmatprep.mubr.f32.mxu0 0.0
  %1004 = vmatmul.mubr.f32.gmra.mrb[0].mxu0 %v937
  %v1005 = vpop.f32.mrb[0].mxu0
  %v1006 = vadd.f32 0.0, %v1005
  %v1007 = vpop.f32.mrb[0].mxu0
  %1008 = vdwg.mxu0
  %v1009 = vadd.f32 %v936, %v1006
  %v1010 = vxor.u32 %v1009, 2147483648
  %v1011 = vmul.f32 %v1010, 1.442695
  %v1012 = vpow.pop %v1011
  %v1013 = vadd.f32 %v1012, 1.0
  %v1014 = vrcp.pop %v1013
  %v1015 = vmul.f32 1.0, %v1014
  %v1016 = vmul.f32 %v1015, 2.0
  %v1017 = vsub.f32 %v1016, 1.0
  %v1018 = vmul.f32 %v1015, %v922
  %1020 = vrot.lane.b32.xlu0 %v1017, 64
  %v1021 = vpop.permute.xlu0 %1020
  %v1023 = vmul.f32 %v1015, %v1021
  %1025 = vrot.lane.b32.xlu0 %v1023, 32
  %v1026 = vpop.permute.xlu0 %1025
  %v1028 = vadd.f32 %v1018, %v1026
  %v1029 = vtanh.pop %v1028
  %1031 = vrot.lane.b32.xlu0 %v1029, 64
  %v1032 = vpop.permute.xlu0 %1031
  %v1034 = vmul.f32 %v1015, %v1032
  %1036 = vrot.lane.b32.xlu0 %v1034, 32
  %v1037 = vpop.permute.xlu0 %1036
  %s1039 = scalar_lea.vmem [#allocation3], 56
  %1040 = vst.msk [vmem:[%s1039] sm:$0xff] %vm194, %v1037
  %v1041 = vld [vmem:[#allocation3] sm:$0xff]
  %v1042 = vld [vmem:[#allocation3 + $0x8] sm:$0xff]
  %v1043 = vld [vmem:[#allocation3 + $0x10] sm:$0xff]
  %v1044 = vld [vmem:[#allocation3 + $0x18] sm:$0xff]
  %v1045 = vld [vmem:[#allocation3 + $0x20] sm:$0xff]
  %v1046 = vld [vmem:[#allocation3 + $0x28] sm:$0xff]
  %v1047 = vld [vmem:[#allocation3 + $0x30] sm:$0xff]
  %v1048 = vld [vmem:[#allocation3 + $0x38] sm:$0xff]
  %v1049 = vld [vmem:[%s4] sm:$0xff]
  %v1050 = vld [vmem:[%s4 + $0x8] sm:$0xff]
  %v1051 = vld [vmem:[%s4 + $0x10] sm:$0xff]
  %v1052 = vld [vmem:[%s4 + $0x18] sm:$0xff]
  %v1053 = vld [vmem:[%s6] sm:$0x1]
  %v1055 = vlaneseq
  %v1056 = vshrl.u32 %v1055, 7
  %v1057 = vsub.s32 0, %v1056
  %v1058 = vrot.slane %v1053, %v1057
  %v1061 = vsel %vm194, %v1041, 0
  %v1064 = vsel %vm194, %v1042, 0
  %v1067 = vsel %vm194, %v1043, 0
  %v1070 = vsel %vm194, %v1044, 0
  %v1073 = vsel %vm194, %v1045, 0
  %v1076 = vsel %vm194, %v1046, 0
  %v1079 = vsel %vm194, %v1047, 0
  %v1082 = vsel %vm194, %v1048, 0
  %1084 = vmatprep.subr.mxu0 0.0
  %1085 = vmatpush1.msra.mxu0 %v1049
  %1086 = vmatprep.subr.mxu0 0.0
  %1087 = vmatpush1.msra.mxu0 %v1050
  %1088 = vmatprep.subr.mxu0 0.0
  %1089 = vmatpush1.msra.mxu0 %v1051
  %1090 = vmatprep.subr.mxu0 0.0
  %1091 = vmatpush1.msra.mxu0 %v1052
  %1092 = vmatprep.subr.mxu0 0.0
  %1093 = vmatpush1.msra.mxu0 0.0
  %1094 = vmatprep.subr.mxu0 0.0
  %1095 = vmatpush1.msra.mxu0 0.0
  %1096 = vmatprep.subr.mxu0 0.0
  %1097 = vmatpush1.msra.mxu0 0.0
  %1098 = vmatprep.subr.mxu0 0.0
  %1099 = vmatpush1.msra.mxu0 0.0
  %1100 = vmatprep.subr.mxu0 0.0
  %1101 = vmatpush1.msra.mxu0 0.0
  %1102 = vmatprep.subr.mxu0 0.0
  %1103 = vmatpush1.msra.mxu0 0.0
  %1104 = vmatprep.subr.mxu0 0.0
  %1105 = vmatpush1.msra.mxu0 0.0
  %1106 = vmatprep.subr.mxu0 0.0
  %1107 = vmatpush1.msra.mxu0 0.0
  %1108 = vmatprep.subr.mxu0 0.0
  %1109 = vmatpush1.msra.mxu0 0.0
  %1110 = vmatprep.subr.mxu0 0.0
  %1111 = vmatpush1.msra.mxu0 0.0
  %1112 = vmatprep.subr.mxu0 0.0
  %1113 = vmatpush1.msra.mxu0 0.0
  %1114 = vmatprep.subr.mxu0 0.0
  %1115 = vmatpush1.msra.mxu0 0.0
  %1116 = vmatprep.subr.mxu0 0.0
  %1117 = vmatpush1.msra.mxu0 0.0
  %1118 = vmatprep.subr.mxu0 0.0
  %1119 = vmatpush1.msra.mxu0 0.0
  %1120 = vmatprep.subr.mxu0 0.0
  %1121 = vmatpush1.msra.mxu0 0.0
  %1122 = vmatprep.subr.mxu0 0.0
  %1123 = vmatpush1.msra.mxu0 0.0
  %1124 = vmatprep.subr.mxu0 0.0
  %1125 = vmatpush1.msra.mxu0 0.0
  %1126 = vmatprep.subr.mxu0 0.0
  %1127 = vmatpush1.msra.mxu0 0.0
  %1128 = vmatprep.subr.mxu0 0.0
  %1129 = vmatpush1.msra.mxu0 0.0
  %1130 = vmatprep.subr.mxu0 0.0
  %1131 = vmatpush1.msra.mxu0 0.0
  %1132 = vmatprep.subr.mxu0 0.0
  %1133 = vmatpush1.msra.mxu0 0.0
  %1134 = vmatprep.subr.mxu0 0.0
  %1135 = vmatpush1.msra.mxu0 0.0
  %1136 = vmatprep.subr.mxu0 0.0
  %1137 = vmatpush1.msra.mxu0 0.0
  %1138 = vmatprep.subr.mxu0 0.0
  %1139 = vmatpush1.msra.mxu0 0.0
  %1140 = vmatprep.subr.mxu0 0.0
  %1141 = vmatpush1.msra.mxu0 0.0
  %1142 = vmatprep.subr.mxu0 0.0
  %1143 = vmatpush1.msra.mxu0 0.0
  %1144 = vmatprep.subr.mxu0 0.0
  %1145 = vmatpush1.msra.mxu0 0.0
  %1146 = vmatprep.subr.mxu0 0.0
  %1147 = vmatpush1.msra.mxu0 0.0
  %1148 = vmatprep.mubr.f32.mxu0 0.0
  %1149 = vmatmul.mubr.f32.gmra.mrb[0].mxu0 %v1061
  %v1150 = vpop.f32.mrb[0].mxu0
  %v1151 = vadd.f32 %v1058, %v1150
  %v1152 = vpop.f32.mrb[0].mxu0
  %1153 = vmatprep.mubr.f32.mxu0 0.0
  %1154 = vmatmul.mubr.f32.gmra.mrb[0].mxu0 %v1064
  %v1155 = vpop.f32.mrb[0].mxu0
  %v1156 = vadd.f32 %v1058, %v1155
  %v1157 = vpop.f32.mrb[0].mxu0
  %1158 = vmatprep.mubr.f32.mxu0 0.0
  %1159 = vmatmul.mubr.f32.gmra.mrb[0].mxu0 %v1067
  %v1160 = vpop.f32.mrb[0].mxu0
  %v1161 = vadd.f32 %v1058, %v1160
  %v1162 = vpop.f32.mrb[0].mxu0
  %1163 = vmatprep.mubr.f32.mxu0 0.0
  %1164 = vmatmul.mubr.f32.gmra.mrb[0].mxu0 %v1070
  %v1165 = vpop.f32.mrb[0].mxu0
  %v1166 = vadd.f32 %v1058, %v1165
  %v1167 = vpop.f32.mrb[0].mxu0
  %1168 = vmatprep.mubr.f32.mxu0 0.0
  %1169 = vmatmul.mubr.f32.gmra.mrb[0].mxu0 %v1073
  %v1170 = vpop.f32.mrb[0].mxu0
  %v1171 = vadd.f32 %v1058, %v1170
  %v1172 = vpop.f32.mrb[0].mxu0
  %1173 = vmatprep.mubr.f32.mxu0 0.0
  %1174 = vmatmul.mubr.f32.gmra.mrb[0].mxu0 %v1076
  %v1175 = vpop.f32.mrb[0].mxu0
  %v1176 = vadd.f32 %v1058, %v1175
  %v1177 = vpop.f32.mrb[0].mxu0
  %1178 = vmatprep.mubr.f32.mxu0 0.0
  %1179 = vmatmul.mubr.f32.gmra.mrb[0].mxu0 %v1079
  %v1180 = vpop.f32.mrb[0].mxu0
  %v1181 = vadd.f32 %v1058, %v1180
  %v1182 = vpop.f32.mrb[0].mxu0
  %1183 = vmatprep.mubr.f32.mxu0 0.0
  %1184 = vmatmul.mubr.f32.gmra.mrb[0].mxu0 %v1082
  %v1185 = vpop.f32.mrb[0].mxu0
  %v1186 = vadd.f32 %v1058, %v1185
  %v1187 = vpop.f32.mrb[0].mxu0
  %1188 = vdwg.mxu0
  %1189 = vst [vmem:[#allocation2] sm:$0xff] %v1151
  %1190 = vst [vmem:[#allocation2 + $0x8] sm:$0xff] %v1156
  %1191 = vst [vmem:[#allocation2 + $0x10] sm:$0xff] %v1161
  %1192 = vst [vmem:[#allocation2 + $0x18] sm:$0xff] %v1166
  %1193 = vst [vmem:[#allocation2 + $0x20] sm:$0xff] %v1171
  %1194 = vst [vmem:[#allocation2 + $0x28] sm:$0xff] %v1176
  %1195 = vst [vmem:[#allocation2 + $0x30] sm:$0xff] %v1181
  %1196 = vst [vmem:[#allocation2 + $0x38] sm:$0xff] %v1186
  %v1197 = vld [vmem:[%s5] sm:$0xff]
  %v1198 = vld [vmem:[%s5 + $0x8] sm:$0xff]
  %v1199 = vld [vmem:[%s5 + $0x10] sm:$0xff]
  %v1200 = vld [vmem:[%s5 + $0x18] sm:$0xff]
  %v1201 = vld [vmem:[#allocation2] sm:$0xff]
  %1202 = vmatprep.subr.mxu0 0.0
  %1203 = vmatpush1.msra.mxu0 %v1197
  %1204 = vmatprep.subr.mxu0 0.0
  %1205 = vmatpush1.msra.mxu0 %v1198
  %1206 = vmatprep.subr.mxu0 0.0
  %1207 = vmatpush1.msra.mxu0 %v1199
  %1208 = vmatprep.subr.mxu0 0.0
  %1209 = vmatpush1.msra.mxu0 %v1200
  %1210 = vmatprep.subr.mxu0 0.0
  %1211 = vmatpush1.msra.mxu0 0.0
  %1212 = vmatprep.subr.mxu0 0.0
  %1213 = vmatpush1.msra.mxu0 0.0
  %1214 = vmatprep.subr.mxu0 0.0
  %1215 = vmatpush1.msra.mxu0 0.0
  %1216 = vmatprep.subr.mxu0 0.0
  %1217 = vmatpush1.msra.mxu0 0.0
  %1218 = vmatprep.subr.mxu0 0.0
  %1219 = vmatpush1.msra.mxu0 0.0
  %1220 = vmatprep.subr.mxu0 0.0
  %1221 = vmatpush1.msra.mxu0 0.0
  %1222 = vmatprep.subr.mxu0 0.0
  %1223 = vmatpush1.msra.mxu0 0.0
  %1224 = vmatprep.subr.mxu0 0.0
  %1225 = vmatpush1.msra.mxu0 0.0
  %1226 = vmatprep.subr.mxu0 0.0
  %1227 = vmatpush1.msra.mxu0 0.0
  %1228 = vmatprep.subr.mxu0 0.0
  %1229 = vmatpush1.msra.mxu0 0.0
  %1230 = vmatprep.subr.mxu0 0.0
  %1231 = vmatpush1.msra.mxu0 0.0
  %1232 = vmatprep.subr.mxu0 0.0
  %1233 = vmatpush1.msra.mxu0 0.0
  %1234 = vmatprep.subr.mxu0 0.0
  %1235 = vmatpush1.msra.mxu0 0.0
  %1236 = vmatprep.subr.mxu0 0.0
  %1237 = vmatpush1.msra.mxu0 0.0
  %1238 = vmatprep.subr.mxu0 0.0
  %1239 = vmatpush1.msra.mxu0 0.0
  %1240 = vmatprep.subr.mxu0 0.0
  %1241 = vmatpush1.msra.mxu0 0.0
  %1242 = vmatprep.subr.mxu0 0.0
  %1243 = vmatpush1.msra.mxu0 0.0
  %1244 = vmatprep.subr.mxu0 0.0
  %1245 = vmatpush1.msra.mxu0 0.0
  %1246 = vmatprep.subr.mxu0 0.0
  %1247 = vmatpush1.msra.mxu0 0.0
  %1248 = vmatprep.subr.mxu0 0.0
  %1249 = vmatpush1.msra.mxu0 0.0
  %1250 = vmatprep.subr.mxu0 0.0
  %1251 = vmatpush1.msra.mxu0 0.0
  %1252 = vmatprep.subr.mxu0 0.0
  %1253 = vmatpush1.msra.mxu0 0.0
  %1254 = vmatprep.subr.mxu0 0.0
  %1255 = vmatpush1.msra.mxu0 0.0
  %1256 = vmatprep.subr.mxu0 0.0
  %1257 = vmatpush1.msra.mxu0 0.0
  %1258 = vmatprep.subr.mxu0 0.0
  %1259 = vmatpush1.msra.mxu0 0.0
  %1260 = vmatprep.subr.mxu0 0.0
  %1261 = vmatpush1.msra.mxu0 0.0
  %1262 = vmatprep.subr.mxu0 0.0
  %1263 = vmatpush1.msra.mxu0 0.0
  %1264 = vmatprep.subr.mxu0 0.0
  %1265 = vmatpush1.msra.mxu0 0.0
  %1266 = vmatprep.mubr.f32.mxu0 0.0
  %1267 = vmatmul.mubr.f32.gmra.mrb[0].mxu0 %v196
  %v1268 = vpop.f32.mrb[0].mxu0
  %v1269 = vadd.f32 0.0, %v1268
  %v1270 = vpop.f32.mrb[0].mxu0
  %1271 = vdwg.mxu0
  %v1272 = vadd.f32 %v1201, %v1269
  %v1273 = vxor.u32 %v1272, 2147483648
  %v1274 = vmul.f32 %v1273, 1.442695
  %v1275 = vpow.pop %v1274
  %v1276 = vadd.f32 %v1275, 1.0
  %v1277 = vrcp.pop %v1276
  %v1278 = vmul.f32 1.0, %v1277
  %v1279 = vmul.f32 %v1278, 2.0
  %v1280 = vsub.f32 %v1279, 1.0
  %v1281 = vmul.f32 %v1278, 0.0
  %1283 = vrot.lane.b32.xlu0 %v1280, 64
  %v1284 = vpop.permute.xlu0 %1283
  %v1286 = vmul.f32 %v1278, %v1284
  %1288 = vrot.lane.b32.xlu0 %v1286, 32
  %v1289 = vpop.permute.xlu0 %1288
  %v1291 = vadd.f32 %v1281, %v1289
  %v1292 = vtanh.pop %v1291
  %1294 = vrot.lane.b32.xlu0 %v1292, 64
  %v1295 = vpop.permute.xlu0 %1294
  %v1297 = vmul.f32 %v1278, %v1295
  %1299 = vrot.lane.b32.xlu0 %v1297, 32
  %v1300 = vpop.permute.xlu0 %1299
  %1302 = vst.msk [vmem:[#allocation3] sm:$0xff] %vm194, %v1300
  %v1303 = vld [vmem:[%s299] sm:$0xff]
  %v1304 = vsel %vm194, %v1300, 0
  %1306 = vmatprep.subr.mxu0 0.0
  %1307 = vmatpush1.msra.mxu0 %v1197
  %1308 = vmatprep.subr.mxu0 0.0
  %1309 = vmatpush1.msra.mxu0 %v1198
  %1310 = vmatprep.subr.mxu0 0.0
  %1311 = vmatpush1.msra.mxu0 %v1199
  %1312 = vmatprep.subr.mxu0 0.0
  %1313 = vmatpush1.msra.mxu0 %v1200
  %1314 = vmatprep.subr.mxu0 0.0
  %1315 = vmatpush1.msra.mxu0 0.0
  %1316 = vmatprep.subr.mxu0 0.0
  %1317 = vmatpush1.msra.mxu0 0.0
  %1318 = vmatprep.subr.mxu0 0.0
  %1319 = vmatpush1.msra.mxu0 0.0
  %1320 = vmatprep.subr.mxu0 0.0
  %1321 = vmatpush1.msra.mxu0 0.0
  %1322 = vmatprep.subr.mxu0 0.0
  %1323 = vmatpush1.msra.mxu0 0.0
  %1324 = vmatprep.subr.mxu0 0.0
  %1325 = vmatpush1.msra.mxu0 0.0
  %1326 = vmatprep.subr.mxu0 0.0
  %1327 = vmatpush1.msra.mxu0 0.0
  %1328 = vmatprep.subr.mxu0 0.0
  %1329 = vmatpush1.msra.mxu0 0.0
  %1330 = vmatprep.subr.mxu0 0.0
  %1331 = vmatpush1.msra.mxu0 0.0
  %1332 = vmatprep.subr.mxu0 0.0
  %1333 = vmatpush1.msra.mxu0 0.0
  %1334 = vmatprep.subr.mxu0 0.0
  %1335 = vmatpush1.msra.mxu0 0.0
  %1336 = vmatprep.subr.mxu0 0.0
  %1337 = vmatpush1.msra.mxu0 0.0
  %1338 = vmatprep.subr.mxu0 0.0
  %1339 = vmatpush1.msra.mxu0 0.0
  %1340 = vmatprep.subr.mxu0 0.0
  %1341 = vmatpush1.msra.mxu0 0.0
  %1342 = vmatprep.subr.mxu0 0.0
  %1343 = vmatpush1.msra.mxu0 0.0
  %1344 = vmatprep.subr.mxu0 0.0
  %1345 = vmatpush1.msra.mxu0 0.0
  %1346 = vmatprep.subr.mxu0 0.0
  %1347 = vmatpush1.msra.mxu0 0.0
  %1348 = vmatprep.subr.mxu0 0.0
  %1349 = vmatpush1.msra.mxu0 0.0
  %1350 = vmatprep.subr.mxu0 0.0
  %1351 = vmatpush1.msra.mxu0 0.0
  %1352 = vmatprep.subr.mxu0 0.0
  %1353 = vmatpush1.msra.mxu0 0.0
  %1354 = vmatprep.subr.mxu0 0.0
  %1355 = vmatpush1.msra.mxu0 0.0
  %1356 = vmatprep.subr.mxu0 0.0
  %1357 = vmatpush1.msra.mxu0 0.0
  %1358 = vmatprep.subr.mxu0 0.0
  %1359 = vmatpush1.msra.mxu0 0.0
  %1360 = vmatprep.subr.mxu0 0.0
  %1361 = vmatpush1.msra.mxu0 0.0
  %1362 = vmatprep.subr.mxu0 0.0
  %1363 = vmatpush1.msra.mxu0 0.0
  %1364 = vmatprep.subr.mxu0 0.0
  %1365 = vmatpush1.msra.mxu0 0.0
  %1366 = vmatprep.subr.mxu0 0.0
  %1367 = vmatpush1.msra.mxu0 0.0
  %1368 = vmatprep.subr.mxu0 0.0
  %1369 = vmatpush1.msra.mxu0 0.0
  %1370 = vmatprep.mubr.f32.mxu0 0.0
  %1371 = vmatmul.mubr.f32.gmra.mrb[0].mxu0 %v1304
  %v1372 = vpop.f32.mrb[0].mxu0
  %v1373 = vadd.f32 0.0, %v1372
  %v1374 = vpop.f32.mrb[0].mxu0
  %1375 = vdwg.mxu0
  %v1376 = vadd.f32 %v1303, %v1373
  %v1377 = vxor.u32 %v1376, 2147483648
  %v1378 = vmul.f32 %v1377, 1.442695
  %v1379 = vpow.pop %v1378
  %v1380 = vadd.f32 %v1379, 1.0
  %v1381 = vrcp.pop %v1380
  %v1382 = vmul.f32 1.0, %v1381
  %v1383 = vmul.f32 %v1382, 2.0
  %v1384 = vsub.f32 %v1383, 1.0
  %v1385 = vmul.f32 %v1382, %v1291
  %1387 = vrot.lane.b32.xlu0 %v1384, 64
  %v1388 = vpop.permute.xlu0 %1387
  %v1390 = vmul.f32 %v1382, %v1388
  %1392 = vrot.lane.b32.xlu0 %v1390, 32
  %v1393 = vpop.permute.xlu0 %1392
  %v1395 = vadd.f32 %v1385, %v1393
  %v1396 = vtanh.pop %v1395
  %1398 = vrot.lane.b32.xlu0 %v1396, 64
  %v1399 = vpop.permute.xlu0 %1398
  %v1401 = vmul.f32 %v1382, %v1399
  %1403 = vrot.lane.b32.xlu0 %v1401, 32
  %v1404 = vpop.permute.xlu0 %1403
  %1406 = vst.msk [vmem:[%s403] sm:$0xff] %vm194, %v1404
  %v1407 = vld [vmem:[%s405] sm:$0xff]
  %v1408 = vsel %vm194, %v1404, 0
  %1410 = vmatprep.subr.mxu0 0.0
  %1411 = vmatpush1.msra.mxu0 %v1197
  %1412 = vmatprep.subr.mxu0 0.0
  %1413 = vmatpush1.msra.mxu0 %v1198
  %1414 = vmatprep.subr.mxu0 0.0
  %1415 = vmatpush1.msra.mxu0 %v1199
  %1416 = vmatprep.subr.mxu0 0.0
  %1417 = vmatpush1.msra.mxu0 %v1200
  %1418 = vmatprep.subr.mxu0 0.0
  %1419 = vmatpush1.msra.mxu0 0.0
  %1420 = vmatprep.subr.mxu0 0.0
  %1421 = vmatpush1.msra.mxu0 0.0
  %1422 = vmatprep.subr.mxu0 0.0
  %1423 = vmatpush1.msra.mxu0 0.0
  %1424 = vmatprep.subr.mxu0 0.0
  %1425 = vmatpush1.msra.mxu0 0.0
  %1426 = vmatprep.subr.mxu0 0.0
  %1427 = vmatpush1.msra.mxu0 0.0
  %1428 = vmatprep.subr.mxu0 0.0
  %1429 = vmatpush1.msra.mxu0 0.0
  %1430 = vmatprep.subr.mxu0 0.0
  %1431 = vmatpush1.msra.mxu0 0.0
  %1432 = vmatprep.subr.mxu0 0.0
  %1433 = vmatpush1.msra.mxu0 0.0
  %1434 = vmatprep.subr.mxu0 0.0
  %1435 = vmatpush1.msra.mxu0 0.0
  %1436 = vmatprep.subr.mxu0 0.0
  %1437 = vmatpush1.msra.mxu0 0.0
  %1438 = vmatprep.subr.mxu0 0.0
  %1439 = vmatpush1.msra.mxu0 0.0
  %1440 = vmatprep.subr.mxu0 0.0
  %1441 = vmatpush1.msra.mxu0 0.0
  %1442 = vmatprep.subr.mxu0 0.0
  %1443 = vmatpush1.msra.mxu0 0.0
  %1444 = vmatprep.subr.mxu0 0.0
  %1445 = vmatpush1.msra.mxu0 0.0
  %1446 = vmatprep.subr.mxu0 0.0
  %1447 = vmatpush1.msra.mxu0 0.0
  %1448 = vmatprep.subr.mxu0 0.0
  %1449 = vmatpush1.msra.mxu0 0.0
  %1450 = vmatprep.subr.mxu0 0.0
  %1451 = vmatpush1.msra.mxu0 0.0
  %1452 = vmatprep.subr.mxu0 0.0
  %1453 = vmatpush1.msra.mxu0 0.0
  %1454 = vmatprep.subr.mxu0 0.0
  %1455 = vmatpush1.msra.mxu0 0.0
  %1456 = vmatprep.subr.mxu0 0.0
  %1457 = vmatpush1.msra.mxu0 0.0
  %1458 = vmatprep.subr.mxu0 0.0
  %1459 = vmatpush1.msra.mxu0 0.0
  %1460 = vmatprep.subr.mxu0 0.0
  %1461 = vmatpush1.msra.mxu0 0.0
  %1462 = vmatprep.subr.mxu0 0.0
  %1463 = vmatpush1.msra.mxu0 0.0
  %1464 = vmatprep.subr.mxu0 0.0
  %1465 = vmatpush1.msra.mxu0 0.0
  %1466 = vmatprep.subr.mxu0 0.0
  %1467 = vmatpush1.msra.mxu0 0.0
  %1468 = vmatprep.subr.mxu0 0.0
  %1469 = vmatpush1.msra.mxu0 0.0
  %1470 = vmatprep.subr.mxu0 0.0
  %1471 = vmatpush1.msra.mxu0 0.0
  %1472 = vmatprep.subr.mxu0 0.0
  %1473 = vmatpush1.msra.mxu0 0.0
  %1474 = vmatprep.mubr.f32.mxu0 0.0
  %1475 = vmatmul.mubr.f32.gmra.mrb[0].mxu0 %v1408
  %v1476 = vpop.f32.mrb[0].mxu0
  %v1477 = vadd.f32 0.0, %v1476
  %v1478 = vpop.f32.mrb[0].mxu0
  %1479 = vdwg.mxu0
  %v1480 = vadd.f32 %v1407, %v1477
  %v1481 = vxor.u32 %v1480, 2147483648
  %v1482 = vmul.f32 %v1481, 1.442695
  %v1483 = vpow.pop %v1482
  %v1484 = vadd.f32 %v1483, 1.0
  %v1485 = vrcp.pop %v1484
  %v1486 = vmul.f32 1.0, %v1485
  %v1487 = vmul.f32 %v1486, 2.0
  %v1488 = vsub.f32 %v1487, 1.0
  %v1489 = vmul.f32 %v1486, %v1395
  %1491 = vrot.lane.b32.xlu0 %v1488, 64
  %v1492 = vpop.permute.xlu0 %1491
  %v1494 = vmul.f32 %v1486, %v1492
  %1496 = vrot.lane.b32.xlu0 %v1494, 32
  %v1497 = vpop.permute.xlu0 %1496
  %v1499 = vadd.f32 %v1489, %v1497
  %v1500 = vtanh.pop %v1499
  %1502 = vrot.lane.b32.xlu0 %v1500, 64
  %v1503 = vpop.permute.xlu0 %1502
  %v1505 = vmul.f32 %v1486, %v1503
  %1507 = vrot.lane.b32.xlu0 %v1505, 32
  %v1508 = vpop.permute.xlu0 %1507
  %1510 = vst.msk [vmem:[%s509] sm:$0xff] %vm194, %v1508
  %v1511 = vld [vmem:[%s511] sm:$0xff]
  %v1512 = vsel %vm194, %v1508, 0
  %1514 = vmatprep.subr.mxu0 0.0
  %1515 = vmatpush1.msra.mxu0 %v1197
  %1516 = vmatprep.subr.mxu0 0.0
  %1517 = vmatpush1.msra.mxu0 %v1198
  %1518 = vmatprep.subr.mxu0 0.0
  %1519 = vmatpush1.msra.mxu0 %v1199
  %1520 = vmatprep.subr.mxu0 0.0
  %1521 = vmatpush1.msra.mxu0 %v1200
  %1522 = vmatprep.subr.mxu0 0.0
  %1523 = vmatpush1.msra.mxu0 0.0
  %1524 = vmatprep.subr.mxu0 0.0
  %1525 = vmatpush1.msra.mxu0 0.0
  %1526 = vmatprep.subr.mxu0 0.0
  %1527 = vmatpush1.msra.mxu0 0.0
  %1528 = vmatprep.subr.mxu0 0.0
  %1529 = vmatpush1.msra.mxu0 0.0
  %1530 = vmatprep.subr.mxu0 0.0
  %1531 = vmatpush1.msra.mxu0 0.0
  %1532 = vmatprep.subr.mxu0 0.0
  %1533 = vmatpush1.msra.mxu0 0.0
  %1534 = vmatprep.subr.mxu0 0.0
  %1535 = vmatpush1.msra.mxu0 0.0
  %1536 = vmatprep.subr.mxu0 0.0
  %1537 = vmatpush1.msra.mxu0 0.0
  %1538 = vmatprep.subr.mxu0 0.0
  %1539 = vmatpush1.msra.mxu0 0.0
  %1540 = vmatprep.subr.mxu0 0.0
  %1541 = vmatpush1.msra.mxu0 0.0
  %1542 = vmatprep.subr.mxu0 0.0
  %1543 = vmatpush1.msra.mxu0 0.0
  %1544 = vmatprep.subr.mxu0 0.0
  %1545 = vmatpush1.msra.mxu0 0.0
  %1546 = vmatprep.subr.mxu0 0.0
  %1547 = vmatpush1.msra.mxu0 0.0
  %1548 = vmatprep.subr.mxu0 0.0
  %1549 = vmatpush1.msra.mxu0 0.0
  %1550 = vmatprep.subr.mxu0 0.0
  %1551 = vmatpush1.msra.mxu0 0.0
  %1552 = vmatprep.subr.mxu0 0.0
  %1553 = vmatpush1.msra.mxu0 0.0
  %1554 = vmatprep.subr.mxu0 0.0
  %1555 = vmatpush1.msra.mxu0 0.0
  %1556 = vmatprep.subr.mxu0 0.0
  %1557 = vmatpush1.msra.mxu0 0.0
  %1558 = vmatprep.subr.mxu0 0.0
  %1559 = vmatpush1.msra.mxu0 0.0
  %1560 = vmatprep.subr.mxu0 0.0
  %1561 = vmatpush1.msra.mxu0 0.0
  %1562 = vmatprep.subr.mxu0 0.0
  %1563 = vmatpush1.msra.mxu0 0.0
  %1564 = vmatprep.subr.mxu0 0.0
  %1565 = vmatpush1.msra.mxu0 0.0
  %1566 = vmatprep.subr.mxu0 0.0
  %1567 = vmatpush1.msra.mxu0 0.0
  %1568 = vmatprep.subr.mxu0 0.0
  %1569 = vmatpush1.msra.mxu0 0.0
  %1570 = vmatprep.subr.mxu0 0.0
  %1571 = vmatpush1.msra.mxu0 0.0
  %1572 = vmatprep.subr.mxu0 0.0
  %1573 = vmatpush1.msra.mxu0 0.0
  %1574 = vmatprep.subr.mxu0 0.0
  %1575 = vmatpush1.msra.mxu0 0.0
  %1576 = vmatprep.subr.mxu0 0.0
  %1577 = vmatpush1.msra.mxu0 0.0
  %1578 = vmatprep.mubr.f32.mxu0 0.0
  %1579 = vmatmul.mubr.f32.gmra.mrb[0].mxu0 %v1512
  %v1580 = vpop.f32.mrb[0].mxu0
  %v1581 = vadd.f32 0.0, %v1580
  %v1582 = vpop.f32.mrb[0].mxu0
  %1583 = vdwg.mxu0
  %v1584 = vadd.f32 %v1511, %v1581
  %v1585 = vxor.u32 %v1584, 2147483648
  %v1586 = vmul.f32 %v1585, 1.442695
  %v1587 = vpow.pop %v1586
  %v1588 = vadd.f32 %v1587, 1.0
  %v1589 = vrcp.pop %v1588
  %v1590 = vmul.f32 1.0, %v1589
  %v1591 = vmul.f32 %v1590, 2.0
  %v1592 = vsub.f32 %v1591, 1.0
  %v1593 = vmul.f32 %v1590, %v1499
  %1595 = vrot.lane.b32.xlu0 %v1592, 64
  %v1596 = vpop.permute.xlu0 %1595
  %v1598 = vmul.f32 %v1590, %v1596
  %1600 = vrot.lane.b32.xlu0 %v1598, 32
  %v1601 = vpop.permute.xlu0 %1600
  %v1603 = vadd.f32 %v1593, %v1601
  %v1604 = vtanh.pop %v1603
  %1606 = vrot.lane.b32.xlu0 %v1604, 64
  %v1607 = vpop.permute.xlu0 %1606
  %v1609 = vmul.f32 %v1590, %v1607
  %1611 = vrot.lane.b32.xlu0 %v1609, 32
  %v1612 = vpop.permute.xlu0 %1611
  %1614 = vst.msk [vmem:[%s615] sm:$0xff] %vm194, %v1612
  %v1615 = vld [vmem:[%s617] sm:$0xff]
  %v1616 = vsel %vm194, %v1612, 0
  %1618 = vmatprep.subr.mxu0 0.0
  %1619 = vmatpush1.msra.mxu0 %v1197
  %1620 = vmatprep.subr.mxu0 0.0
  %1621 = vmatpush1.msra.mxu0 %v1198
  %1622 = vmatprep.subr.mxu0 0.0
  %1623 = vmatpush1.msra.mxu0 %v1199
  %1624 = vmatprep.subr.mxu0 0.0
  %1625 = vmatpush1.msra.mxu0 %v1200
  %1626 = vmatprep.subr.mxu0 0.0
  %1627 = vmatpush1.msra.mxu0 0.0
  %1628 = vmatprep.subr.mxu0 0.0
  %1629 = vmatpush1.msra.mxu0 0.0
  %1630 = vmatprep.subr.mxu0 0.0
  %1631 = vmatpush1.msra.mxu0 0.0
  %1632 = vmatprep.subr.mxu0 0.0
  %1633 = vmatpush1.msra.mxu0 0.0
  %1634 = vmatprep.subr.mxu0 0.0
  %1635 = vmatpush1.msra.mxu0 0.0
  %1636 = vmatprep.subr.mxu0 0.0
  %1637 = vmatpush1.msra.mxu0 0.0
  %1638 = vmatprep.subr.mxu0 0.0
  %1639 = vmatpush1.msra.mxu0 0.0
  %1640 = vmatprep.subr.mxu0 0.0
  %1641 = vmatpush1.msra.mxu0 0.0
  %1642 = vmatprep.subr.mxu0 0.0
  %1643 = vmatpush1.msra.mxu0 0.0
  %1644 = vmatprep.subr.mxu0 0.0
  %1645 = vmatpush1.msra.mxu0 0.0
  %1646 = vmatprep.subr.mxu0 0.0
  %1647 = vmatpush1.msra.mxu0 0.0
  %1648 = vmatprep.subr.mxu0 0.0
  %1649 = vmatpush1.msra.mxu0 0.0
  %1650 = vmatprep.subr.mxu0 0.0
  %1651 = vmatpush1.msra.mxu0 0.0
  %1652 = vmatprep.subr.mxu0 0.0
  %1653 = vmatpush1.msra.mxu0 0.0
  %1654 = vmatprep.subr.mxu0 0.0
  %1655 = vmatpush1.msra.mxu0 0.0
  %1656 = vmatprep.subr.mxu0 0.0
  %1657 = vmatpush1.msra.mxu0 0.0
  %1658 = vmatprep.subr.mxu0 0.0
  %1659 = vmatpush1.msra.mxu0 0.0
  %1660 = vmatprep.subr.mxu0 0.0
  %1661 = vmatpush1.msra.mxu0 0.0
  %1662 = vmatprep.subr.mxu0 0.0
  %1663 = vmatpush1.msra.mxu0 0.0
  %1664 = vmatprep.subr.mxu0 0.0
  %1665 = vmatpush1.msra.mxu0 0.0
  %1666 = vmatprep.subr.mxu0 0.0
  %1667 = vmatpush1.msra.mxu0 0.0
  %1668 = vmatprep.subr.mxu0 0.0
  %1669 = vmatpush1.msra.mxu0 0.0
  %1670 = vmatprep.subr.mxu0 0.0
  %1671 = vmatpush1.msra.mxu0 0.0
  %1672 = vmatprep.subr.mxu0 0.0
  %1673 = vmatpush1.msra.mxu0 0.0
  %1674 = vmatprep.subr.mxu0 0.0
  %1675 = vmatpush1.msra.mxu0 0.0
  %1676 = vmatprep.subr.mxu0 0.0
  %1677 = vmatpush1.msra.mxu0 0.0
  %1678 = vmatprep.subr.mxu0 0.0
  %1679 = vmatpush1.msra.mxu0 0.0
  %1680 = vmatprep.subr.mxu0 0.0
  %1681 = vmatpush1.msra.mxu0 0.0
  %1682 = vmatprep.mubr.f32.mxu0 0.0
  %1683 = vmatmul.mubr.f32.gmra.mrb[0].mxu0 %v1616
  %v1684 = vpop.f32.mrb[0].mxu0
  %v1685 = vadd.f32 0.0, %v1684
  %v1686 = vpop.f32.mrb[0].mxu0
  %1687 = vdwg.mxu0
  %v1688 = vadd.f32 %v1615, %v1685
  %v1689 = vxor.u32 %v1688, 2147483648
  %v1690 = vmul.f32 %v1689, 1.442695
  %v1691 = vpow.pop %v1690
  %v1692 = vadd.f32 %v1691, 1.0
  %v1693 = vrcp.pop %v1692
  %v1694 = vmul.f32 1.0, %v1693
  %v1695 = vmul.f32 %v1694, 2.0
  %v1696 = vsub.f32 %v1695, 1.0
  %v1697 = vmul.f32 %v1694, %v1603
  %1699 = vrot.lane.b32.xlu0 %v1696, 64
  %v1700 = vpop.permute.xlu0 %1699
  %v1702 = vmul.f32 %v1694, %v1700
  %1704 = vrot.lane.b32.xlu0 %v1702, 32
  %v1705 = vpop.permute.xlu0 %1704
  %v1707 = vadd.f32 %v1697, %v1705
  %v1708 = vtanh.pop %v1707
  %1710 = vrot.lane.b32.xlu0 %v1708, 64
  %v1711 = vpop.permute.xlu0 %1710
  %v1713 = vmul.f32 %v1694, %v1711
  %1715 = vrot.lane.b32.xlu0 %v1713, 32
  %v1716 = vpop.permute.xlu0 %1715
  %1718 = vst.msk [vmem:[%s721] sm:$0xff] %vm194, %v1716
  %v1719 = vld [vmem:[%s723] sm:$0xff]
  %v1720 = vsel %vm194, %v1716, 0
  %1722 = vmatprep.subr.mxu0 0.0
  %1723 = vmatpush1.msra.mxu0 %v1197
  %1724 = vmatprep.subr.mxu0 0.0
  %1725 = vmatpush1.msra.mxu0 %v1198
  %1726 = vmatprep.subr.mxu0 0.0
  %1727 = vmatpush1.msra.mxu0 %v1199
  %1728 = vmatprep.subr.mxu0 0.0
  %1729 = vmatpush1.msra.mxu0 %v1200
  %1730 = vmatprep.subr.mxu0 0.0
  %1731 = vmatpush1.msra.mxu0 0.0
  %1732 = vmatprep.subr.mxu0 0.0
  %1733 = vmatpush1.msra.mxu0 0.0
  %1734 = vmatprep.subr.mxu0 0.0
  %1735 = vmatpush1.msra.mxu0 0.0
  %1736 = vmatprep.subr.mxu0 0.0
  %1737 = vmatpush1.msra.mxu0 0.0
  %1738 = vmatprep.subr.mxu0 0.0
  %1739 = vmatpush1.msra.mxu0 0.0
  %1740 = vmatprep.subr.mxu0 0.0
  %1741 = vmatpush1.msra.mxu0 0.0
  %1742 = vmatprep.subr.mxu0 0.0
  %1743 = vmatpush1.msra.mxu0 0.0
  %1744 = vmatprep.subr.mxu0 0.0
  %1745 = vmatpush1.msra.mxu0 0.0
  %1746 = vmatprep.subr.mxu0 0.0
  %1747 = vmatpush1.msra.mxu0 0.0
  %1748 = vmatprep.subr.mxu0 0.0
  %1749 = vmatpush1.msra.mxu0 0.0
  %1750 = vmatprep.subr.mxu0 0.0
  %1751 = vmatpush1.msra.mxu0 0.0
  %1752 = vmatprep.subr.mxu0 0.0
  %1753 = vmatpush1.msra.mxu0 0.0
  %1754 = vmatprep.subr.mxu0 0.0
  %1755 = vmatpush1.msra.mxu0 0.0
  %1756 = vmatprep.subr.mxu0 0.0
  %1757 = vmatpush1.msra.mxu0 0.0
  %1758 = vmatprep.subr.mxu0 0.0
  %1759 = vmatpush1.msra.mxu0 0.0
  %1760 = vmatprep.subr.mxu0 0.0
  %1761 = vmatpush1.msra.mxu0 0.0
  %1762 = vmatprep.subr.mxu0 0.0
  %1763 = vmatpush1.msra.mxu0 0.0
  %1764 = vmatprep.subr.mxu0 0.0
  %1765 = vmatpush1.msra.mxu0 0.0
  %1766 = vmatprep.subr.mxu0 0.0
  %1767 = vmatpush1.msra.mxu0 0.0
  %1768 = vmatprep.subr.mxu0 0.0
  %1769 = vmatpush1.msra.mxu0 0.0
  %1770 = vmatprep.subr.mxu0 0.0
  %1771 = vmatpush1.msra.mxu0 0.0
  %1772 = vmatprep.subr.mxu0 0.0
  %1773 = vmatpush1.msra.mxu0 0.0
  %1774 = vmatprep.subr.mxu0 0.0
  %1775 = vmatpush1.msra.mxu0 0.0
  %1776 = vmatprep.subr.mxu0 0.0
  %1777 = vmatpush1.msra.mxu0 0.0
  %1778 = vmatprep.subr.mxu0 0.0
  %1779 = vmatpush1.msra.mxu0 0.0
  %1780 = vmatprep.subr.mxu0 0.0
  %1781 = vmatpush1.msra.mxu0 0.0
  %1782 = vmatprep.subr.mxu0 0.0
  %1783 = vmatpush1.msra.mxu0 0.0
  %1784 = vmatprep.subr.mxu0 0.0
  %1785 = vmatpush1.msra.mxu0 0.0
  %1786 = vmatprep.mubr.f32.mxu0 0.0
  %1787 = vmatmul.mubr.f32.gmra.mrb[0].mxu0 %v1720
  %v1788 = vpop.f32.mrb[0].mxu0
  %v1789 = vadd.f32 0.0, %v1788
  %v1790 = vpop.f32.mrb[0].mxu0
  %1791 = vdwg.mxu0
  %v1792 = vadd.f32 %v1719, %v1789
  %v1793 = vxor.u32 %v1792, 2147483648
  %v1794 = vmul.f32 %v1793, 1.442695
  %v1795 = vpow.pop %v1794
  %v1796 = vadd.f32 %v1795, 1.0
  %v1797 = vrcp.pop %v1796
  %v1798 = vmul.f32 1.0, %v1797
  %v1799 = vmul.f32 %v1798, 2.0
  %v1800 = vsub.f32 %v1799, 1.0
  %v1801 = vmul.f32 %v1798, %v1707
  %1803 = vrot.lane.b32.xlu0 %v1800, 64
  %v1804 = vpop.permute.xlu0 %1803
  %v1806 = vmul.f32 %v1798, %v1804
  %1808 = vrot.lane.b32.xlu0 %v1806, 32
  %v1809 = vpop.permute.xlu0 %1808
  %v1811 = vadd.f32 %v1801, %v1809
  %v1812 = vtanh.pop %v1811
  %1814 = vrot.lane.b32.xlu0 %v1812, 64
  %v1815 = vpop.permute.xlu0 %1814
  %v1817 = vmul.f32 %v1798, %v1815
  %1819 = vrot.lane.b32.xlu0 %v1817, 32
  %v1820 = vpop.permute.xlu0 %1819
  %1822 = vst.msk [vmem:[%s827] sm:$0xff] %vm194, %v1820
  %v1823 = vld [vmem:[%s829] sm:$0xff]
  %v1824 = vsel %vm194, %v1820, 0
  %1826 = vmatprep.subr.mxu0 0.0
  %1827 = vmatpush1.msra.mxu0 %v1197
  %1828 = vmatprep.subr.mxu0 0.0
  %1829 = vmatpush1.msra.mxu0 %v1198
  %1830 = vmatprep.subr.mxu0 0.0
  %1831 = vmatpush1.msra.mxu0 %v1199
  %1832 = vmatprep.subr.mxu0 0.0
  %1833 = vmatpush1.msra.mxu0 %v1200
  %1834 = vmatprep.subr.mxu0 0.0
  %1835 = vmatpush1.msra.mxu0 0.0
  %1836 = vmatprep.subr.mxu0 0.0
  %1837 = vmatpush1.msra.mxu0 0.0
  %1838 = vmatprep.subr.mxu0 0.0
  %1839 = vmatpush1.msra.mxu0 0.0
  %1840 = vmatprep.subr.mxu0 0.0
  %1841 = vmatpush1.msra.mxu0 0.0
  %1842 = vmatprep.subr.mxu0 0.0
  %1843 = vmatpush1.msra.mxu0 0.0
  %1844 = vmatprep.subr.mxu0 0.0
  %1845 = vmatpush1.msra.mxu0 0.0
  %1846 = vmatprep.subr.mxu0 0.0
  %1847 = vmatpush1.msra.mxu0 0.0
  %1848 = vmatprep.subr.mxu0 0.0
  %1849 = vmatpush1.msra.mxu0 0.0
  %1850 = vmatprep.subr.mxu0 0.0
  %1851 = vmatpush1.msra.mxu0 0.0
  %1852 = vmatprep.subr.mxu0 0.0
  %1853 = vmatpush1.msra.mxu0 0.0
  %1854 = vmatprep.subr.mxu0 0.0
  %1855 = vmatpush1.msra.mxu0 0.0
  %1856 = vmatprep.subr.mxu0 0.0
  %1857 = vmatpush1.msra.mxu0 0.0
  %1858 = vmatprep.subr.mxu0 0.0
  %1859 = vmatpush1.msra.mxu0 0.0
  %1860 = vmatprep.subr.mxu0 0.0
  %1861 = vmatpush1.msra.mxu0 0.0
  %1862 = vmatprep.subr.mxu0 0.0
  %1863 = vmatpush1.msra.mxu0 0.0
  %1864 = vmatprep.subr.mxu0 0.0
  %1865 = vmatpush1.msra.mxu0 0.0
  %1866 = vmatprep.subr.mxu0 0.0
  %1867 = vmatpush1.msra.mxu0 0.0
  %1868 = vmatprep.subr.mxu0 0.0
  %1869 = vmatpush1.msra.mxu0 0.0
  %1870 = vmatprep.subr.mxu0 0.0
  %1871 = vmatpush1.msra.mxu0 0.0
  %1872 = vmatprep.subr.mxu0 0.0
  %1873 = vmatpush1.msra.mxu0 0.0
  %1874 = vmatprep.subr.mxu0 0.0
  %1875 = vmatpush1.msra.mxu0 0.0
  %1876 = vmatprep.subr.mxu0 0.0
  %1877 = vmatpush1.msra.mxu0 0.0
  %1878 = vmatprep.subr.mxu0 0.0
  %1879 = vmatpush1.msra.mxu0 0.0
  %1880 = vmatprep.subr.mxu0 0.0
  %1881 = vmatpush1.msra.mxu0 0.0
  %1882 = vmatprep.subr.mxu0 0.0
  %1883 = vmatpush1.msra.mxu0 0.0
  %1884 = vmatprep.subr.mxu0 0.0
  %1885 = vmatpush1.msra.mxu0 0.0
  %1886 = vmatprep.subr.mxu0 0.0
  %1887 = vmatpush1.msra.mxu0 0.0
  %1888 = vmatprep.subr.mxu0 0.0
  %1889 = vmatpush1.msra.mxu0 0.0
  %1890 = vmatprep.mubr.f32.mxu0 0.0
  %1891 = vmatmul.mubr.f32.gmra.mrb[0].mxu0 %v1824
  %v1892 = vpop.f32.mrb[0].mxu0
  %v1893 = vadd.f32 0.0, %v1892
  %v1894 = vpop.f32.mrb[0].mxu0
  %1895 = vdwg.mxu0
  %v1896 = vadd.f32 %v1823, %v1893
  %v1897 = vxor.u32 %v1896, 2147483648
  %v1898 = vmul.f32 %v1897, 1.442695
  %v1899 = vpow.pop %v1898
  %v1900 = vadd.f32 %v1899, 1.0
  %v1901 = vrcp.pop %v1900
  %v1902 = vmul.f32 1.0, %v1901
  %v1903 = vmul.f32 %v1902, 2.0
  %v1904 = vsub.f32 %v1903, 1.0
  %v1905 = vmul.f32 %v1902, %v1811
  %1907 = vrot.lane.b32.xlu0 %v1904, 64
  %v1908 = vpop.permute.xlu0 %1907
  %v1910 = vmul.f32 %v1902, %v1908
  %1912 = vrot.lane.b32.xlu0 %v1910, 32
  %v1913 = vpop.permute.xlu0 %1912
  %v1915 = vadd.f32 %v1905, %v1913
  %v1916 = vtanh.pop %v1915
  %1918 = vrot.lane.b32.xlu0 %v1916, 64
  %v1919 = vpop.permute.xlu0 %1918
  %v1921 = vmul.f32 %v1902, %v1919
  %1923 = vrot.lane.b32.xlu0 %v1921, 32
  %v1924 = vpop.permute.xlu0 %1923
  %1926 = vst.msk [vmem:[%s933] sm:$0xff] %vm194, %v1924
  %v1927 = vld [vmem:[%s935] sm:$0xff]
  %v1928 = vsel %vm194, %v1924, 0
  %1930 = vmatprep.subr.mxu0 0.0
  %1931 = vmatpush1.msra.mxu0 %v1197
  %1932 = vmatprep.subr.mxu0 0.0
  %1933 = vmatpush1.msra.mxu0 %v1198
  %1934 = vmatprep.subr.mxu0 0.0
  %1935 = vmatpush1.msra.mxu0 %v1199
  %1936 = vmatprep.subr.mxu0 0.0
  %1937 = vmatpush1.msra.mxu0 %v1200
  %1938 = vmatprep.subr.mxu0 0.0
  %1939 = vmatpush1.msra.mxu0 0.0
  %1940 = vmatprep.subr.mxu0 0.0
  %1941 = vmatpush1.msra.mxu0 0.0
  %1942 = vmatprep.subr.mxu0 0.0
  %1943 = vmatpush1.msra.mxu0 0.0
  %1944 = vmatprep.subr.mxu0 0.0
  %1945 = vmatpush1.msra.mxu0 0.0
  %1946 = vmatprep.subr.mxu0 0.0
  %1947 = vmatpush1.msra.mxu0 0.0
  %1948 = vmatprep.subr.mxu0 0.0
  %1949 = vmatpush1.msra.mxu0 0.0
  %1950 = vmatprep.subr.mxu0 0.0
  %1951 = vmatpush1.msra.mxu0 0.0
  %1952 = vmatprep.subr.mxu0 0.0
  %1953 = vmatpush1.msra.mxu0 0.0
  %1954 = vmatprep.subr.mxu0 0.0
  %1955 = vmatpush1.msra.mxu0 0.0
  %1956 = vmatprep.subr.mxu0 0.0
  %1957 = vmatpush1.msra.mxu0 0.0
  %1958 = vmatprep.subr.mxu0 0.0
  %1959 = vmatpush1.msra.mxu0 0.0
  %1960 = vmatprep.subr.mxu0 0.0
  %1961 = vmatpush1.msra.mxu0 0.0
  %1962 = vmatprep.subr.mxu0 0.0
  %1963 = vmatpush1.msra.mxu0 0.0
  %1964 = vmatprep.subr.mxu0 0.0
  %1965 = vmatpush1.msra.mxu0 0.0
  %1966 = vmatprep.subr.mxu0 0.0
  %1967 = vmatpush1.msra.mxu0 0.0
  %1968 = vmatprep.subr.mxu0 0.0
  %1969 = vmatpush1.msra.mxu0 0.0
  %1970 = vmatprep.subr.mxu0 0.0
  %1971 = vmatpush1.msra.mxu0 0.0
  %1972 = vmatprep.subr.mxu0 0.0
  %1973 = vmatpush1.msra.mxu0 0.0
  %1974 = vmatprep.subr.mxu0 0.0
  %1975 = vmatpush1.msra.mxu0 0.0
  %1976 = vmatprep.subr.mxu0 0.0
  %1977 = vmatpush1.msra.mxu0 0.0
  %1978 = vmatprep.subr.mxu0 0.0
  %1979 = vmatpush1.msra.mxu0 0.0
  %1980 = vmatprep.subr.mxu0 0.0
  %1981 = vmatpush1.msra.mxu0 0.0
  %1982 = vmatprep.subr.mxu0 0.0
  %1983 = vmatpush1.msra.mxu0 0.0
  %1984 = vmatprep.subr.mxu0 0.0
  %1985 = vmatpush1.msra.mxu0 0.0
  %1986 = vmatprep.subr.mxu0 0.0
  %1987 = vmatpush1.msra.mxu0 0.0
  %1988 = vmatprep.subr.mxu0 0.0
  %1989 = vmatpush1.msra.mxu0 0.0
  %1990 = vmatprep.subr.mxu0 0.0
  %1991 = vmatpush1.msra.mxu0 0.0
  %1992 = vmatprep.subr.mxu0 0.0
  %1993 = vmatpush1.msra.mxu0 0.0
  %1994 = vmatprep.mubr.f32.mxu0 0.0
  %1995 = vmatmul.mubr.f32.gmra.mrb[0].mxu0 %v1928
  %v1996 = vpop.f32.mrb[0].mxu0
  %v1997 = vadd.f32 0.0, %v1996
  %v1998 = vpop.f32.mrb[0].mxu0
  %1999 = vdwg.mxu0
  %v2000 = vadd.f32 %v1927, %v1997
  %v2001 = vxor.u32 %v2000, 2147483648
  %v2002 = vmul.f32 %v2001, 1.442695
  %v2003 = vpow.pop %v2002
  %v2004 = vadd.f32 %v2003, 1.0
  %v2005 = vrcp.pop %v2004
  %v2006 = vmul.f32 1.0, %v2005
  %v2007 = vmul.f32 %v2006, 2.0
  %v2008 = vsub.f32 %v2007, 1.0
  %v2009 = vmul.f32 %v2006, %v1915
  %2011 = vrot.lane.b32.xlu0 %v2008, 64
  %v2012 = vpop.permute.xlu0 %2011
  %v2014 = vmul.f32 %v2006, %v2012
  %2016 = vrot.lane.b32.xlu0 %v2014, 32
  %v2017 = vpop.permute.xlu0 %2016
  %v2019 = vadd.f32 %v2009, %v2017
  %v2020 = vtanh.pop %v2019
  %2022 = vrot.lane.b32.xlu0 %v2020, 64
  %v2023 = vpop.permute.xlu0 %2022
  %v2025 = vmul.f32 %v2006, %v2023
  %2027 = vrot.lane.b32.xlu0 %v2025, 32
  %v2028 = vpop.permute.xlu0 %2027
  %2030 = vst.msk [vmem:[%s1039] sm:$0xff] %vm194, %v2028
  %v2031 = vld [vmem:[#allocation3] sm:$0xff]
  %v2032 = vld [vmem:[#allocation3 + $0x8] sm:$0xff]
  %v2033 = vld [vmem:[#allocation3 + $0x10] sm:$0xff]
  %v2034 = vld [vmem:[#allocation3 + $0x18] sm:$0xff]
  %v2035 = vld [vmem:[#allocation3 + $0x20] sm:$0xff]
  %v2036 = vld [vmem:[#allocation3 + $0x28] sm:$0xff]
  %v2037 = vld [vmem:[#allocation3 + $0x30] sm:$0xff]
  %v2038 = vld [vmem:[#allocation3 + $0x38] sm:$0xff]
  %v2039 = vld [vmem:[%s7] sm:$0xff]
  %v2040 = vld [vmem:[%s7 + $0x8] sm:$0xff]
  %v2041 = vld [vmem:[%s7 + $0x10] sm:$0xff]
  %v2042 = vld [vmem:[%s7 + $0x18] sm:$0xff]
  %v2043 = vld [vmem:[#allocation4] sm:$0x1]
  %v2045 = vlaneseq
  %v2046 = vshrl.u32 %v2045, 7
  %v2047 = vsub.s32 0, %v2046
  %v2048 = vrot.slane %v2043, %v2047
  %v2051 = vsel %vm194, %v2031, 0
  %v2054 = vsel %vm194, %v2032, 0
  %v2057 = vsel %vm194, %v2033, 0
  %v2060 = vsel %vm194, %v2034, 0
  %v2063 = vsel %vm194, %v2035, 0
  %v2066 = vsel %vm194, %v2036, 0
  %v2069 = vsel %vm194, %v2037, 0
  %v2072 = vsel %vm194, %v2038, 0
  %2074 = vmatprep.subr.mxu0 0.0
  %2075 = vmatpush1.msra.mxu0 %v2039
  %2076 = vmatprep.subr.mxu0 0.0
  %2077 = vmatpush1.msra.mxu0 %v2040
  %2078 = vmatprep.subr.mxu0 0.0
  %2079 = vmatpush1.msra.mxu0 %v2041
  %2080 = vmatprep.subr.mxu0 0.0
  %2081 = vmatpush1.msra.mxu0 %v2042
  %2082 = vmatprep.subr.mxu0 0.0
  %2083 = vmatpush1.msra.mxu0 0.0
  %2084 = vmatprep.subr.mxu0 0.0
  %2085 = vmatpush1.msra.mxu0 0.0
  %2086 = vmatprep.subr.mxu0 0.0
  %2087 = vmatpush1.msra.mxu0 0.0
  %2088 = vmatprep.subr.mxu0 0.0
  %2089 = vmatpush1.msra.mxu0 0.0
  %2090 = vmatprep.subr.mxu0 0.0
  %2091 = vmatpush1.msra.mxu0 0.0
  %2092 = vmatprep.subr.mxu0 0.0
  %2093 = vmatpush1.msra.mxu0 0.0
  %2094 = vmatprep.subr.mxu0 0.0
  %2095 = vmatpush1.msra.mxu0 0.0
  %2096 = vmatprep.subr.mxu0 0.0
  %2097 = vmatpush1.msra.mxu0 0.0
  %2098 = vmatprep.subr.mxu0 0.0
  %2099 = vmatpush1.msra.mxu0 0.0
  %2100 = vmatprep.subr.mxu0 0.0
  %2101 = vmatpush1.msra.mxu0 0.0
  %2102 = vmatprep.subr.mxu0 0.0
  %2103 = vmatpush1.msra.mxu0 0.0
  %2104 = vmatprep.subr.mxu0 0.0
  %2105 = vmatpush1.msra.mxu0 0.0
  %2106 = vmatprep.subr.mxu0 0.0
  %2107 = vmatpush1.msra.mxu0 0.0
  %2108 = vmatprep.subr.mxu0 0.0
  %2109 = vmatpush1.msra.mxu0 0.0
  %2110 = vmatprep.subr.mxu0 0.0
  %2111 = vmatpush1.msra.mxu0 0.0
  %2112 = vmatprep.subr.mxu0 0.0
  %2113 = vmatpush1.msra.mxu0 0.0
  %2114 = vmatprep.subr.mxu0 0.0
  %2115 = vmatpush1.msra.mxu0 0.0
  %2116 = vmatprep.subr.mxu0 0.0
  %2117 = vmatpush1.msra.mxu0 0.0
  %2118 = vmatprep.subr.mxu0 0.0
  %2119 = vmatpush1.msra.mxu0 0.0
  %2120 = vmatprep.subr.mxu0 0.0
  %2121 = vmatpush1.msra.mxu0 0.0
  %2122 = vmatprep.subr.mxu0 0.0
  %2123 = vmatpush1.msra.mxu0 0.0
  %2124 = vmatprep.subr.mxu0 0.0
  %2125 = vmatpush1.msra.mxu0 0.0
  %2126 = vmatprep.subr.mxu0 0.0
  %2127 = vmatpush1.msra.mxu0 0.0
  %2128 = vmatprep.subr.mxu0 0.0
  %2129 = vmatpush1.msra.mxu0 0.0
  %2130 = vmatprep.subr.mxu0 0.0
  %2131 = vmatpush1.msra.mxu0 0.0
  %2132 = vmatprep.subr.mxu0 0.0
  %2133 = vmatpush1.msra.mxu0 0.0
  %2134 = vmatprep.subr.mxu0 0.0
  %2135 = vmatpush1.msra.mxu0 0.0
  %2136 = vmatprep.subr.mxu0 0.0
  %2137 = vmatpush1.msra.mxu0 0.0
  %2138 = vmatprep.mubr.f32.mxu0 0.0
  %2139 = vmatmul.mubr.f32.gmra.mrb[0].mxu0 %v2051
  %v2140 = vpop.f32.mrb[0].mxu0
  %v2141 = vadd.f32 %v2048, %v2140
  %v2142 = vpop.f32.mrb[0].mxu0
  %2143 = vmatprep.mubr.f32.mxu0 0.0
  %2144 = vmatmul.mubr.f32.gmra.mrb[0].mxu0 %v2054
  %v2145 = vpop.f32.mrb[0].mxu0
  %v2146 = vadd.f32 %v2048, %v2145
  %v2147 = vpop.f32.mrb[0].mxu0
  %2148 = vmatprep.mubr.f32.mxu0 0.0
  %2149 = vmatmul.mubr.f32.gmra.mrb[0].mxu0 %v2057
  %v2150 = vpop.f32.mrb[0].mxu0
  %v2151 = vadd.f32 %v2048, %v2150
  %v2152 = vpop.f32.mrb[0].mxu0
  %2153 = vmatprep.mubr.f32.mxu0 0.0
  %2154 = vmatmul.mubr.f32.gmra.mrb[0].mxu0 %v2060
  %v2155 = vpop.f32.mrb[0].mxu0
  %v2156 = vadd.f32 %v2048, %v2155
  %v2157 = vpop.f32.mrb[0].mxu0
  %2158 = vmatprep.mubr.f32.mxu0 0.0
  %2159 = vmatmul.mubr.f32.gmra.mrb[0].mxu0 %v2063
  %v2160 = vpop.f32.mrb[0].mxu0
  %v2161 = vadd.f32 %v2048, %v2160
  %v2162 = vpop.f32.mrb[0].mxu0
  %2163 = vmatprep.mubr.f32.mxu0 0.0
  %2164 = vmatmul.mubr.f32.gmra.mrb[0].mxu0 %v2066
  %v2165 = vpop.f32.mrb[0].mxu0
  %v2166 = vadd.f32 %v2048, %v2165
  %v2167 = vpop.f32.mrb[0].mxu0
  %2168 = vmatprep.mubr.f32.mxu0 0.0
  %2169 = vmatmul.mubr.f32.gmra.mrb[0].mxu0 %v2069
  %v2170 = vpop.f32.mrb[0].mxu0
  %v2171 = vadd.f32 %v2048, %v2170
  %v2172 = vpop.f32.mrb[0].mxu0
  %2173 = vmatprep.mubr.f32.mxu0 0.0
  %2174 = vmatmul.mubr.f32.gmra.mrb[0].mxu0 %v2072
  %v2175 = vpop.f32.mrb[0].mxu0
  %v2176 = vadd.f32 %v2048, %v2175
  %v2177 = vpop.f32.mrb[0].mxu0
  %2178 = vdwg.mxu0
  %vm2179 = vcmask 7168
  %2180 = vst.msk [vmem:[%s9] sm:$0xff] %vm2179, %v2141
  %2181 = vst.msk [vmem:[%s9 + $0x8] sm:$0xff] %vm2179, %v2146
  %2182 = vst.msk [vmem:[%s9 + $0x10] sm:$0xff] %vm2179, %v2151
  %2183 = vst.msk [vmem:[%s9 + $0x18] sm:$0xff] %vm2179, %v2156
  %2184 = vst.msk [vmem:[%s9 + $0x20] sm:$0xff] %vm2179, %v2161
  %2185 = vst.msk [vmem:[%s9 + $0x28] sm:$0xff] %vm2179, %v2166
  %2186 = vst.msk [vmem:[%s9 + $0x30] sm:$0xff] %vm2179, %v2171
  %2187 = vst.msk [vmem:[%s9 + $0x38] sm:$0xff] %vm2179, %v2176
  // Predicated region
  $region38: #{lstm_module_forward.1} parent=0 // pred_check
    _
  $region39: #{lstm_module_forward.1} parent=0 // pred_check_branch
    %2189 = sbr.rel (0) target = $region41
  $region40: #{lstm_module_forward.1} parent=0 // pred_region
    _
  $region41: #{lstm_module_forward.1} parent=0 // pred_fallthru
    _
  // Predicated region
  $region42: #{lstm_module_forward.1} parent=0 // pred_check
    _
  $region43: #{lstm_module_forward.1} parent=0 // pred_check_branch
    %2191 = sbr.rel (0) target = $region45
  $region44: #{lstm_module_forward.1} parent=0 // pred_region
    _
  $region45: #{lstm_module_forward.1} parent=0 // pred_fallthru
    _

</llo_original>
